<compile_context>
chip_gen: v6e
topology: v6e:2x2x1
jax: 0.10.0
libtpu: 0.0.40
codegen_flags: <defaults>
</compile_context>

<pallas_src>
import functools

import jax
import jax.numpy as jnp
from jax.experimental import pallas as pl
from jax.experimental.pallas import tpu as pltpu

_NEG_BIG = -1e30  # bias for padded softmax columns -> exp() underflows to 0


def _round_up(x, m):
    return (x + m - 1) // m * m


def _pad2(a, rows, cols, value=0.0):
    pr, pc = rows - a.shape[0], cols - a.shape[1]
    if pr == 0 and pc == 0:
        return a
    return jnp.pad(a, ((0, pr), (0, pc)), constant_values=value)


def _tile_interleave(mats, tn):
    """Interleave per-gene-tile column blocks of several (R, n_out_pad) matrices.

    Result columns are ordered [tile0: m0 | m1 | ..., tile1: m0 | m1 | ...] so one
    BlockSpec of width len(mats)*tn fetches all heads for a gene tile at once.
    """
    r = mats[0].shape[0]
    nt = mats[0].shape[1] // tn
    stacked = jnp.stack([m.reshape(r, nt, tn) for m in mats], axis=2)  # (R,nt,k,tn)
    return stacked.reshape(r, nt * len(mats) * tn)


def _vmem_limit_bytes():
    """Generation-aware scoped-VMEM limit with headroom."""
    try:
        cap = int(pltpu.get_tpu_info().vmem_capacity_bytes)
    except Exception:
        cap = 64 * 1024 * 1024
    return max(32 * 1024 * 1024, min(100 * 1024 * 1024, (cap * 3) // 4))


def _vmem_footprint(bm, tn, in_pad, hid_pad, k):
    """Rough per-step VMEM bytes (double-buffered inputs/outputs + scratch)."""
    inputs = 2 * (bm * in_pad * 2 + bm * 4
                  + in_pad * hid_pad * 2 + hid_pad * 4
                  + hid_pad * tn * 2 + tn * 4
                  + hid_pad * k * tn * 2 + k * tn * 4)
    outputs = 2 * (2 * bm * tn * 4 + (k - 1) * bm * tn * 2)   # f32 scale/rate, bf16 drop/r
    scratch = bm * hid_pad * 2 + 2 * bm * 4
    return inputs + outputs + scratch


# --------------------------------------------------------------------------- #
# Kernel
# --------------------------------------------------------------------------- #
def _decoder_kernel(xcat_ref, explib_ref, w0_ref, b0_ref, ws_ref, bs_ref,
                    wh_ref, bh_ref, *outs_and_scratch, tn, compute_r):
    if compute_r:
        (scale_ref, rate_ref, drop_ref, r_ref,
         h_buf, m_buf, l_buf) = outs_and_scratch
    else:
        (scale_ref, rate_ref, drop_ref,
         h_buf, m_buf, l_buf) = outs_and_scratch
        r_ref = None

    p = pl.program_id(1)   # 0: softmax statistics pass, 1: emit pass
    j = pl.program_id(2)   # gene tile

    # First inner step of this batch tile: compute h once, reset softmax stats.
    @pl.when(jnp.logical_and(p == 0, j == 0))
    def _init():
        hx = jnp.dot(xcat_ref[...], w0_ref[...],
                     preferred_element_type=jnp.float32) + b0_ref[...]
        h_buf[...] = jnp.maximum(hx, 0.0).astype(h_buf.dtype)
        m_buf[...] = jnp.full_like(m_buf, -jnp.inf)
        l_buf[...] = jnp.zeros_like(l_buf)

    h = h_buf[...]                                            # (bm, hid) bf16

    @pl.when(p == 0)
    def _stats():  # online max / sum-of-exp accumulation (scale head only)
        logits = jnp.dot(h, ws_ref[...],
                         preferred_element_type=jnp.float32) + bs_ref[...]
        t_max = jnp.max(logits, axis=-1, keepdims=True)
        m_new = jnp.maximum(m_buf[...], t_max)
        l_buf[...] = (l_buf[...] * jnp.exp(m_buf[...] - m_new)
                      + jnp.sum(jnp.exp(logits - m_new), axis=-1, keepdims=True))
        m_buf[...] = m_new

    @pl.when(p == 1)
    def _emit():
        # One fused matmul for all heads of this gene tile: [scale | (r) | drop].
        heads = jnp.dot(h, wh_ref[...],
                        preferred_element_type=jnp.float32) + bh_ref[...]
        logits = heads[:, :tn]
        inv_l = pl.reciprocal(l_buf[...], approx=False)       # exact: feeds log()
        scale = jnp.exp(logits - m_buf[...]) * inv_l
        scale_ref[...] = scale.astype(scale_ref.dtype)
        rate_ref[...] = (explib_ref[...] * scale).astype(rate_ref.dtype)
        if compute_r:
            r_ref[...] = heads[:, tn:2 * tn].astype(r_ref.dtype)
            drop_ref[...] = heads[:, 2 * tn:].astype(drop_ref.dtype)
        else:
            drop_ref[...] = heads[:, tn:].astype(drop_ref.dtype)


# --------------------------------------------------------------------------- #
# Parameter preparation (do once, reuse across forward calls)
# --------------------------------------------------------------------------- #
def prepare_decoder_params(dispersion, params, *, gene_block=1024):
    """Pad, cast to bf16 and interleave the decoder weights once."""
    assert gene_block >= 128
    f32, bf16 = jnp.float32, jnp.bfloat16
    in_dim, n_hidden = params["w0"].shape
    n_output = params["ws"].shape[1]
    compute_r = dispersion == "gene-cell"

    in_pad = _round_up(in_dim, 128)
    hid_pad = _round_up(n_hidden, 128)
    tn = min(_round_up(gene_block, 128), _round_up(n_output, 128))
    n_out_pad = _round_up(n_output, tn)

    w0_p = _pad2(params["w0"].astype(f32), in_pad, hid_pad).astype(bf16)
    b0_p = _pad2(params["b0"].astype(f32), 1, hid_pad)
    ws_p = _pad2(params["ws"].astype(f32), hid_pad, n_out_pad).astype(bf16)
    bs_p = _pad2(params["bs"].astype(f32), 1, n_out_pad, value=_NEG_BIG)
    wd_p = _pad2(params["wd"].astype(f32), hid_pad, n_out_pad).astype(bf16)
    bd_p = _pad2(params["bd"].astype(f32), 1, n_out_pad)
    if compute_r:
        wr_p = _pad2(params["wr"].astype(f32), hid_pad, n_out_pad).astype(bf16)
        br_p = _pad2(params["br"].astype(f32), 1, n_out_pad)
        head_w, head_b = [ws_p, wr_p, wd_p], [bs_p, br_p, bd_p]
    else:
        head_w, head_b = [ws_p, wd_p], [bs_p, bd_p]

    return dict(
        dispersion=dispersion, compute_r=compute_r,
        in_dim=in_dim, in_pad=in_pad, hid_pad=hid_pad,
        n_output=n_output, n_out_pad=n_out_pad, tn=tn, k_heads=len(head_w),
        w0=w0_p, b0=b0_p, ws=ws_p, bs=bs_p,
        w_heads=_tile_interleave(head_w, tn),
        b_heads=_tile_interleave(head_b, tn),
    )


# --------------------------------------------------------------------------- #
# Forward pass
# --------------------------------------------------------------------------- #
def decoder_scvi_forward(prep, z, library, cat_onehots=(), *, batch_block=1024):
    f32, bf16 = jnp.float32, jnp.bfloat16
    xcat = jnp.concatenate([z, *cat_onehots], axis=-1) if len(cat_onehots) else z
    B, in_dim = xcat.shape
    assert in_dim == prep["in_dim"], "input dim mismatch with prepared params"

    in_pad, hid_pad = prep["in_pad"], prep["hid_pad"]
    tn, n_out_pad, k = prep["tn"], prep["n_out_pad"], prep["k_heads"]
    n_output, compute_r = prep["n_output"], prep["compute_r"]
    nt = n_out_pad // tn

    vmem_limit = _vmem_limit_bytes()

    # Batch tile: multiple of 16 (bf16 output packing), >= 2 tiles when possible
    # so the leading "parallel" axis feeds both v7x TensorCores; shrink until the
    # per-step footprint fits the generation's VMEM budget.
    batch_block = max(16, _round_up(batch_block, 16))
    bm = min(batch_block, max(16, _round_up(-(-B // 2), 16)))
    while bm > 16 and _vmem_footprint(bm, tn, in_pad, hid_pad, k) > (vmem_limit * 9) // 10:
        bm = max(16, _round_up(bm // 2, 16))
    b_pad = _round_up(B, bm)
    n_bi = b_pad // bm

    # ---- per-call input prep (weights were prepared once) -------------------
    xcat_p = _pad2(xcat.astype(f32), b_pad, in_pad).astype(bf16)
    explib_p = _pad2(jnp.exp(library.astype(f32)), b_pad, 1)   # hoisted exp(library)

    # ---- pallas_call ---------------------------------------------------------
    grid = (n_bi, 2, nt)
    out_shape = [jax.ShapeDtypeStruct((b_pad, n_out_pad), f32),    # px_scale
                 jax.ShapeDtypeStruct((b_pad, n_out_pad), f32)]    # px_rate
    out_shape.append(jax.ShapeDtypeStruct((b_pad, n_out_pad), bf16))  # px_dropout
    if compute_r:
        out_shape.append(jax.ShapeDtypeStruct((b_pad, n_out_pad), bf16))  # px_r
    n_outs = len(out_shape)

    # During the stats pass (p==0) the output windows stay on gene tile 0 (never
    # written, never flushed); during the emit pass (p==1) they walk the gene
    # tiles.  Keep the p axis strictly before j and "arbitrary".
    out_spec = pl.BlockSpec((bm, tn), lambda bi, p, j: (bi, j * p))
    out_specs = [out_spec] * n_outs

    in_specs = [
        pl.BlockSpec((bm, in_pad), lambda bi, p, j: (bi, 0)),              # xcat
        pl.BlockSpec((bm, 1), lambda bi, p, j: (bi, 0)),                   # exp(library)
        pl.BlockSpec((in_pad, hid_pad), lambda bi, p, j: (0, 0)),          # w0
        pl.BlockSpec((1, hid_pad), lambda bi, p, j: (0, 0)),               # b0
        pl.BlockSpec((hid_pad, tn), lambda bi, p, j: (0, j * (1 - p))),    # ws (pass 0)
        pl.BlockSpec((1, tn), lambda bi, p, j: (0, j * (1 - p))),          # bs (pass 0)
        pl.BlockSpec((hid_pad, k * tn), lambda bi, p, j: (0, j * p)),      # heads (pass 1)
        pl.BlockSpec((1, k * tn), lambda bi, p, j: (0, j * p)),            # head bias
    ]
    scratch_shapes = [
        pltpu.VMEM((bm, hid_pad), bf16),   # h, computed once per batch tile
        pltpu.VMEM((bm, 1), f32),          # running max    (softmax)
        pltpu.VMEM((bm, 1), f32),          # running sumexp (softmax)
    ]

    # Advisory cost estimate so XLA schedules producers/consumers sensibly.
    flops = int(2 * b_pad * in_pad * hid_pad
                + 2 * b_pad * hid_pad * n_out_pad * (1 + k))
    transcendentals = int(b_pad * (2 * n_out_pad + 2 * nt))
    bytes_accessed = int(
        xcat_p.size * 2 + explib_p.size * 4
        + prep["w0"].size * 2 + prep["b0"].size * 4
        + n_bi * (prep["ws"].size * 2 + prep["bs"].size * 4
                  + prep["w_heads"].size * 2 + prep["b_heads"].size * 4)
        + 2 * b_pad * n_out_pad * 4 + (k - 1) * b_pad * n_out_pad * 2)

    kernel = pl.pallas_call(
        functools.partial(_decoder_kernel, tn=tn, compute_r=compute_r),
        out_shape=tuple(out_shape),
        grid_spec=pltpu.PrefetchScalarGridSpec(
            num_scalar_prefetch=0,
            grid=grid,
            in_specs=in_specs,
            out_specs=out_specs,
            scratch_shapes=scratch_shapes,
        ),
        compiler_params=pltpu.CompilerParams(
            dimension_semantics=("parallel", "arbitrary", "arbitrary"),
            vmem_limit_bytes=vmem_limit,
        ),
        cost_estimate=pl.CostEstimate(
            flops=flops, transcendentals=transcendentals,
            bytes_accessed=bytes_accessed),
    )

    outs = kernel(xcat_p, explib_p, prep["w0"], prep["b0"], prep["ws"],
                  prep["bs"], prep["w_heads"], prep["b_heads"])
    if compute_r:
        scale_p, rate_p, drop_p, r_p = outs
    else:
        scale_p, rate_p, drop_p = outs
        r_p = None

    crop = lambda a: a[:B, :n_output]
    px_scale = crop(scale_p)
    px_rate = crop(rate_p)
    px_dropout = crop(drop_p)
    px_r = crop(r_p) if compute_r else None
    return px_scale, px_r, px_rate, px_dropout


def decoder_scvi_pallas(dispersion, z, library, cat_onehots, params, *,
                        batch_block=1024, gene_block=1024):
    """Convenience wrapper: prepare weights + run forward (prep is cacheable)."""
    prep = prepare_decoder_params(dispersion, params, gene_block=gene_block)
    return decoder_scvi_forward(prep, z, library, cat_onehots,
                                batch_block=batch_block)


# --------------------------------------------------------------------------- #
# Pure-JAX reference (mirrors the kernel's bf16-weight / f32-accum math)
# --------------------------------------------------------------------------- #
def _reference(dispersion, z, library, cat_onehots, params):
    f32, bf16 = jnp.float32, jnp.bfloat16
    xcat = jnp.concatenate([z, *cat_onehots], axis=-1) if cat_onehots else z
    xb = xcat.astype(bf16)
    w0, ws = params["w0"].astype(bf16), params["ws"].astype(bf16)
    wr, wd = params["wr"].astype(bf16), params["wd"].astype(bf16)

    h = jnp.maximum(jnp.dot(xb, w0, preferred_element_type=f32)
                    + params["b0"], 0.0)
    hb = h.astype(bf16)
    logits = jnp.dot(hb, ws, preferred_element_type=f32) + params["bs"]
    px_scale = jax.nn.softmax(logits, axis=-1)
    px_dropout = jnp.dot(hb, wd, preferred_element_type=f32) + params["bd"]
    px_rate = jnp.exp(library) * px_scale
    px_r = (jnp.dot(hb, wr, preferred_element_type=f32) + params["br"]
            if dispersion == "gene-cell" else None)
    return px_scale, px_r, px_rate, px_dropout


if __name__ == "__main__":
    # Small shapes (deliberately ragged to exercise batch/gene padding).
    B = 24           # cells, not a multiple of the batch tile
    n_input = 16     # latent dim
    n_cats = (4, 3)  # two categorical covariates
    n_hidden = 128   # scVI default (already lane-aligned)
    n_output = 200   # genes (padded to 256 inside the kernel)

    in_dim = n_input + sum(n_cats)
    key = jax.random.PRNGKey(0)
    ks = jax.random.split(key, 16)

    def lin(kw, kb, fan_in, fan_out):
        bound = 1.0 / jnp.sqrt(float(fan_in))
        w = jax.random.uniform(kw, (fan_in, fan_out), jnp.float32, -bound, bound)
        b = jax.random.uniform(kb, (1, fan_out), jnp.float32, -bound, bound)
        return w, b

    w0, b0 = lin(ks[0], ks[1], in_dim, n_hidden)     # px_decoder Layer 0
    ws, bs = lin(ks[2], ks[3], n_hidden, n_output)   # px_scale_decoder linear
    wr, br = lin(ks[4], ks[5], n_hidden, n_output)   # px_r_decoder
    wd, bd = lin(ks[6], ks[7], n_hidden, n_output)   # px_dropout_decoder
    params = dict(w0=w0, b0=b0, ws=ws, bs=bs, wr=wr, br=br, wd=wd, bd=bd)

    z = jax.random.normal(ks[8], (B, n_input), jnp.float32)
    library = jax.random.normal(ks[9], (B, 1), jnp.float32)
    cat_onehots = [
        jax.nn.one_hot(jax.random.randint(ks[10 + i], (B,), 0, nc), nc,
                       dtype=jnp.float32)
        for i, nc in enumerate(n_cats)
    ]

    names = ("px_scale", "px_r", "px_rate", "px_dropout")
    # px_r / px_dropout are emitted in bf16 -> looser absolute tolerance.
    tols = {"px_scale": (1e-4, 2e-2), "px_rate": (1e-4, 2e-2),
            "px_r": (1e-2, 2e-2), "px_dropout": (1e-2, 2e-2)}

    for dispersion in ("gene-cell", "gene"):   # 'gene' path skips the r head
        prep = prepare_decoder_params(dispersion, params, gene_block=1024)
        out = decoder_scvi_forward(prep, z, library, cat_onehots,
                                   batch_block=1024)
        out = jax.block_until_ready(out)
        ref = _reference(dispersion, z, library, cat_onehots, params)
        for name, a, b in zip(names, out, ref):
            if a is None and b is None:
                continue
            assert a.shape == b.shape, f"shape mismatch in {name}"
            atol, rtol = tols[name]
            assert jnp.allclose(a.astype(jnp.float32), b, atol=atol, rtol=rtol), (
                f"mismatch in {name} ({dispersion})")

    print("KERNEL_OK")
</pallas_src>

<mosaic_0001>
module attributes {stable_mosaic.version = 11 : i64} {
  func.func @_decoder_kernel(%arg0: i32, %arg1: i32, %arg2: i32, %arg3: memref<16x128xbf16, #tpu.memory_space<vmem>>, %arg4: memref<16x1xf32, #tpu.memory_space<vmem>>, %arg5: memref<128x128xbf16, #tpu.memory_space<vmem>>, %arg6: memref<1x128xf32, #tpu.memory_space<vmem>>, %arg7: memref<128x256xbf16, #tpu.memory_space<vmem>>, %arg8: memref<1x256xf32, #tpu.memory_space<vmem>>, %arg9: memref<128x768xbf16, #tpu.memory_space<vmem>>, %arg10: memref<1x768xf32, #tpu.memory_space<vmem>>, %arg11: memref<16x256xf32, #tpu.memory_space<vmem>>, %arg12: memref<16x256xf32, #tpu.memory_space<vmem>>, %arg13: memref<16x256xbf16, #tpu.memory_space<vmem>>, %arg14: memref<16x256xbf16, #tpu.memory_space<vmem>>, %arg15: memref<16x128xbf16, #tpu.memory_space<vmem>>, %arg16: memref<16x1xf32, #tpu.memory_space<vmem>>, %arg17: memref<16x1xf32, #tpu.memory_space<vmem>>) attributes {dimension_semantics = [#tpu.dimension_semantics<parallel>, #tpu.dimension_semantics<arbitrary>, #tpu.dimension_semantics<arbitrary>], iteration_bounds = array<i64: 2, 2, 1>, scalar_prefetch = 0 : i64, scratch_operands = 3 : i64, tpu.core_type = #tpu.core_type<tc>, window_params = [{transform_indices = @transform_0, window_bounds = array<i64: 16, 128>}, {transform_indices = @transform_1, window_bounds = array<i64: 16, 1>}, {pipeline_mode = #tpu.pipeline_mode<synchronous>, transform_indices = @transform_2, window_bounds = array<i64: 128, 128>}, {pipeline_mode = #tpu.pipeline_mode<synchronous>, transform_indices = @transform_3, window_bounds = array<i64: 1, 128>}, {transform_indices = @transform_4, window_bounds = array<i64: 128, 256>}, {transform_indices = @transform_5, window_bounds = array<i64: 1, 256>}, {transform_indices = @transform_6, window_bounds = array<i64: 128, 768>}, {transform_indices = @transform_7, window_bounds = array<i64: 1, 768>}, {transform_indices = @transform_8, window_bounds = array<i64: 16, 256>}, {transform_indices = @transform_9, window_bounds = array<i64: 16, 256>}, {transform_indices = @transform_10, window_bounds = array<i64: 16, 256>}, {transform_indices = @transform_11, window_bounds = array<i64: 16, 256>}]} {
    %c0_i32 = arith.constant 0 : i32
    %0 = arith.cmpi eq, %arg1, %c0_i32 : i32
    %c0_i32_0 = arith.constant 0 : i32
    %1 = arith.cmpi eq, %arg2, %c0_i32_0 : i32
    %2 = arith.andi %0, %1 : i1
    %3 = arith.extui %2 : i1 to i32
    %c0_i32_1 = arith.constant 0 : i32
    %4 = arith.cmpi ne, %3, %c0_i32_1 : i32
    scf.if %4 {
      %c0_6 = arith.constant 0 : index
      %c0_7 = arith.constant 0 : index
      %12 = vector.load %arg3[%c0_6, %c0_7] : memref<16x128xbf16, #tpu.memory_space<vmem>>, vector<16x128xbf16>
      %c0_8 = arith.constant 0 : index
      %c0_9 = arith.constant 0 : index
      %13 = vector.load %arg5[%c0_8, %c0_9] : memref<128x128xbf16, #tpu.memory_space<vmem>>, vector<128x128xbf16>
      %cst = arith.constant dense<0.000000e+00> : vector<16x128xf32>
      %14 = tpu.matmul %12, %13, %cst {dimension_numbers = #tpu.dot_dimension_numbers<[1], [0], [0], [1], [0, 0, 1, 1], [], []>} : vector<16x128xbf16>, vector<128x128xbf16>, vector<16x128xf32> -> vector<16x128xf32>
      %c0_10 = arith.constant 0 : index
      %c0_11 = arith.constant 0 : index
      %15 = vector.load %arg6[%c0_10, %c0_11] : memref<1x128xf32, #tpu.memory_space<vmem>>, vector<1x128xf32>
      %16 = vector.broadcast %15 : vector<1x128xf32> to vector<16x128xf32>
      %17 = arith.addf %14, %16 : vector<16x128xf32>
      %cst_12 = arith.constant 0.000000e+00 : f32
      %18 = vector.broadcast %cst_12 : f32 to vector<16x128xf32>
      %19 = arith.maximumf %17, %18 : vector<16x128xf32>
      %20 = arith.truncf %19 : vector<16x128xf32> to vector<16x128xbf16>
      %c0_13 = arith.constant 0 : index
      %c0_14 = arith.constant 0 : index
      %21 = vector.load %arg15[%c0_13, %c0_14] : memref<16x128xbf16, #tpu.memory_space<vmem>>, vector<16x128xbf16>
      tpu.vector_store %arg15[%c0_13, %c0_14], %20 {strides = array<i32>} : memref<16x128xbf16, #tpu.memory_space<vmem>>, vector<16x128xbf16>,
      %cst_15 = arith.constant 0xFF800000 : f32
      %22 = vector.broadcast %cst_15 : f32 to vector<16x1xf32>
      %c0_16 = arith.constant 0 : index
      %c0_17 = arith.constant 0 : index
      %23 = vector.load %arg16[%c0_16, %c0_17] : memref<16x1xf32, #tpu.memory_space<vmem>>, vector<16x1xf32>
      tpu.vector_store %arg16[%c0_16, %c0_17], %22 {strides = array<i32>} : memref<16x1xf32, #tpu.memory_space<vmem>>, vector<16x1xf32>,
      %cst_18 = arith.constant 0.000000e+00 : f32
      %24 = vector.broadcast %cst_18 : f32 to vector<16x1xf32>
      %c0_19 = arith.constant 0 : index
      %c0_20 = arith.constant 0 : index
      %25 = vector.load %arg17[%c0_19, %c0_20] : memref<16x1xf32, #tpu.memory_space<vmem>>, vector<16x1xf32>
      tpu.vector_store %arg17[%c0_19, %c0_20], %24 {strides = array<i32>} : memref<16x1xf32, #tpu.memory_space<vmem>>, vector<16x1xf32>,
    } else {
    }
    %c0 = arith.constant 0 : index
    %c0_2 = arith.constant 0 : index
    %5 = vector.load %arg15[%c0, %c0_2] : memref<16x128xbf16, #tpu.memory_space<vmem>>, vector<16x128xbf16>
    %c0_i32_3 = arith.constant 0 : i32
    %6 = arith.cmpi eq, %arg1, %c0_i32_3 : i32
    %7 = arith.extui %6 : i1 to i32
    %c0_i32_4 = arith.constant 0 : i32
    %8 = arith.cmpi ne, %7, %c0_i32_4 : i32
    scf.if %8 {
      %c0_6 = arith.constant 0 : index
      %c0_7 = arith.constant 0 : index
      %12 = vector.load %arg7[%c0_6, %c0_7] : memref<128x256xbf16, #tpu.memory_space<vmem>>, vector<128x256xbf16>
      %cst = arith.constant dense<0.000000e+00> : vector<16x256xf32>
      %13 = tpu.matmul %5, %12, %cst {dimension_numbers = #tpu.dot_dimension_numbers<[1], [0], [0], [1], [0, 0, 1, 1], [], []>} : vector<16x128xbf16>, vector<128x256xbf16>, vector<16x256xf32> -> vector<16x256xf32>
      %c0_8 = arith.constant 0 : index
      %c0_9 = arith.constant 0 : index
      %14 = vector.load %arg8[%c0_8, %c0_9] : memref<1x256xf32, #tpu.memory_space<vmem>>, vector<1x256xf32>
      %15 = vector.broadcast %14 : vector<1x256xf32> to vector<16x256xf32>
      %16 = arith.addf %13, %15 : vector<16x256xf32>
      %cst_10 = arith.constant dense<0xFF800000> : vector<16xf32>
      %17 = vector.multi_reduction <maximumf>, %16, %cst_10 [1] : vector<16x256xf32> to vector<16xf32>
      %18 = vector.shape_cast %17 : vector<16xf32> to vector<16x1xf32>
      %c0_11 = arith.constant 0 : index
      %c0_12 = arith.constant 0 : index
      %19 = vector.load %arg16[%c0_11, %c0_12] : memref<16x1xf32, #tpu.memory_space<vmem>>, vector<16x1xf32>
      %20 = arith.maximumf %19, %18 : vector<16x1xf32>
      %c0_13 = arith.constant 0 : index
      %c0_14 = arith.constant 0 : index
      %21 = vector.load %arg17[%c0_13, %c0_14] : memref<16x1xf32, #tpu.memory_space<vmem>>, vector<16x1xf32>
      %c0_15 = arith.constant 0 : index
      %c0_16 = arith.constant 0 : index
      %22 = vector.load %arg16[%c0_15, %c0_16] : memref<16x1xf32, #tpu.memory_space<vmem>>, vector<16x1xf32>
      %23 = arith.subf %22, %20 : vector<16x1xf32>
      %24 = math.exp %23 : vector<16x1xf32>
      %25 = arith.mulf %21, %24 : vector<16x1xf32>
      %26 = vector.broadcast %20 : vector<16x1xf32> to vector<16x256xf32>
      %27 = arith.subf %16, %26 : vector<16x256xf32>
      %28 = math.exp %27 : vector<16x256xf32>
      %cst_17 = arith.constant dense<0.000000e+00> : vector<16xf32>
      %29 = vector.multi_reduction <add>, %28, %cst_17 [1] : vector<16x256xf32> to vector<16xf32>
      %30 = vector.shape_cast %29 : vector<16xf32> to vector<16x1xf32>
      %31 = arith.addf %25, %30 : vector<16x1xf32>
      %c0_18 = arith.constant 0 : index
      %c0_19 = arith.constant 0 : index
      %32 = vector.load %arg17[%c0_18, %c0_19] : memref<16x1xf32, #tpu.memory_space<vmem>>, vector<16x1xf32>
      tpu.vector_store %arg17[%c0_18, %c0_19], %31 {strides = array<i32>} : memref<16x1xf32, #tpu.memory_space<vmem>>, vector<16x1xf32>,
      %c0_20 = arith.constant 0 : index
      %c0_21 = arith.constant 0 : index
      %33 = vector.load %arg16[%c0_20, %c0_21] : memref<16x1xf32, #tpu.memory_space<vmem>>, vector<16x1xf32>
      tpu.vector_store %arg16[%c0_20, %c0_21], %20 {strides = array<i32>} : memref<16x1xf32, #tpu.memory_space<vmem>>, vector<16x1xf32>,
    } else {
    }
    %c1_i32 = arith.constant 1 : i32
    %9 = arith.cmpi eq, %arg1, %c1_i32 : i32
    %10 = arith.extui %9 : i1 to i32
    %c0_i32_5 = arith.constant 0 : i32
    %11 = arith.cmpi ne, %10, %c0_i32_5 : i32
    scf.if %11 {
      %c0_6 = arith.constant 0 : index
      %c0_7 = arith.constant 0 : index
      %12 = vector.load %arg9[%c0_6, %c0_7] : memref<128x768xbf16, #tpu.memory_space<vmem>>, vector<128x768xbf16>
      %cst = arith.constant dense<0.000000e+00> : vector<16x768xf32>
      %13 = tpu.matmul %5, %12, %cst {dimension_numbers = #tpu.dot_dimension_numbers<[1], [0], [0], [1], [0, 0, 1, 1], [], []>} : vector<16x128xbf16>, vector<128x768xbf16>, vector<16x768xf32> -> vector<16x768xf32>
      %c0_8 = arith.constant 0 : index
      %c0_9 = arith.constant 0 : index
      %14 = vector.load %arg10[%c0_8, %c0_9] : memref<1x768xf32, #tpu.memory_space<vmem>>, vector<1x768xf32>
      %15 = vector.broadcast %14 : vector<1x768xf32> to vector<16x768xf32>
      %16 = arith.addf %13, %15 : vector<16x768xf32>
      %17 = vector.extract_strided_slice %16 {offsets = [0, 0], sizes = [16, 256], strides = [1, 1]} : vector<16x768xf32> to vector<16x256xf32>
      %c0_10 = arith.constant 0 : index
      %c0_11 = arith.constant 0 : index
      %18 = vector.load %arg17[%c0_10, %c0_11] : memref<16x1xf32, #tpu.memory_space<vmem>>, vector<16x1xf32>
      %19 = tpu.reciprocal %18 : vector<16x1xf32> -> vector<16x1xf32>
      %c0_12 = arith.constant 0 : index
      %c0_13 = arith.constant 0 : index
      %20 = vector.load %arg16[%c0_12, %c0_13] : memref<16x1xf32, #tpu.memory_space<vmem>>, vector<16x1xf32>
      %21 = vector.broadcast %20 : vector<16x1xf32> to vector<16x256xf32>
      %22 = arith.subf %17, %21 : vector<16x256xf32>
      %23 = math.exp %22 : vector<16x256xf32>
      %24 = vector.broadcast %19 : vector<16x1xf32> to vector<16x256xf32>
      %25 = arith.mulf %23, %24 : vector<16x256xf32>
      %c0_14 = arith.constant 0 : index
      %c0_15 = arith.constant 0 : index
      %26 = vector.load %arg11[%c0_14, %c0_15] : memref<16x256xf32, #tpu.memory_space<vmem>>, vector<16x256xf32>
      tpu.vector_store %arg11[%c0_14, %c0_15], %25 {strides = array<i32>} : memref<16x256xf32, #tpu.memory_space<vmem>>, vector<16x256xf32>,
      %c0_16 = arith.constant 0 : index
      %c0_17 = arith.constant 0 : index
      %27 = vector.load %arg4[%c0_16, %c0_17] : memref<16x1xf32, #tpu.memory_space<vmem>>, vector<16x1xf32>
      %28 = vector.broadcast %27 : vector<16x1xf32> to vector<16x256xf32>
      %29 = arith.mulf %28, %25 : vector<16x256xf32>
      %c0_18 = arith.constant 0 : index
      %c0_19 = arith.constant 0 : index
      %30 = vector.load %arg12[%c0_18, %c0_19] : memref<16x256xf32, #tpu.memory_space<vmem>>, vector<16x256xf32>
      tpu.vector_store %arg12[%c0_18, %c0_19], %29 {strides = array<i32>} : memref<16x256xf32, #tpu.memory_space<vmem>>, vector<16x256xf32>,
      %31 = vector.extract_strided_slice %16 {offsets = [0, 256], sizes = [16, 256], strides = [1, 1]} : vector<16x768xf32> to vector<16x256xf32>
      %32 = arith.truncf %31 : vector<16x256xf32> to vector<16x256xbf16>
      %c0_20 = arith.constant 0 : index
      %c0_21 = arith.constant 0 : index
      %33 = vector.load %arg14[%c0_20, %c0_21] : memref<16x256xbf16, #tpu.memory_space<vmem>>, vector<16x256xbf16>
      tpu.vector_store %arg14[%c0_20, %c0_21], %32 {strides = array<i32>} : memref<16x256xbf16, #tpu.memory_space<vmem>>, vector<16x256xbf16>,
      %34 = vector.extract_strided_slice %16 {offsets = [0, 512], sizes = [16, 256], strides = [1, 1]} : vector<16x768xf32> to vector<16x256xf32>
      %35 = arith.truncf %34 : vector<16x256xf32> to vector<16x256xbf16>
      %c0_22 = arith.constant 0 : index
      %c0_23 = arith.constant 0 : index
      %36 = vector.load %arg13[%c0_22, %c0_23] : memref<16x256xbf16, #tpu.memory_space<vmem>>, vector<16x256xbf16>
      tpu.vector_store %arg13[%c0_22, %c0_23], %35 {strides = array<i32>} : memref<16x256xbf16, #tpu.memory_space<vmem>>, vector<16x256xbf16>,
    } else {
    }
    return
  }
  func.func @transform_0(%arg0: i32, %arg1: i32, %arg2: i32) -> (i32, i32) {
    %c0_i32 = arith.constant 0 : i32
    %c0_i32_0 = arith.constant 0 : i32
    return %arg0, %c0_i32 : i32, i32
  }
  func.func @transform_1(%arg0: i32, %arg1: i32, %arg2: i32) -> (i32, i32) {
    %c0_i32 = arith.constant 0 : i32
    %c0_i32_0 = arith.constant 0 : i32
    return %arg0, %c0_i32 : i32, i32
  }
  func.func @transform_2(%arg0: i32, %arg1: i32, %arg2: i32) -> (i32, i32) {
    %c0_i32 = arith.constant 0 : i32
    %c0_i32_0 = arith.constant 0 : i32
    %c0_i32_1 = arith.constant 0 : i32
    return %c0_i32, %c0_i32_0 : i32, i32
  }
  func.func @transform_3(%arg0: i32, %arg1: i32, %arg2: i32) -> (i32, i32) {
    %c0_i32 = arith.constant 0 : i32
    %c0_i32_0 = arith.constant 0 : i32
    %c0_i32_1 = arith.constant 0 : i32
    return %c0_i32, %c0_i32_0 : i32, i32
  }
  func.func @transform_4(%arg0: i32, %arg1: i32, %arg2: i32) -> (i32, i32) {
    %c1_i32 = arith.constant 1 : i32
    %0 = arith.subi %c1_i32, %arg1 : i32
    %1 = arith.muli %arg2, %0 : i32
    %c0_i32 = arith.constant 0 : i32
    %c0_i32_0 = arith.constant 0 : i32
    return %c0_i32, %1 : i32, i32
  }
  func.func @transform_5(%arg0: i32, %arg1: i32, %arg2: i32) -> (i32, i32) {
    %c1_i32 = arith.constant 1 : i32
    %0 = arith.subi %c1_i32, %arg1 : i32
    %1 = arith.muli %arg2, %0 : i32
    %c0_i32 = arith.constant 0 : i32
    %c0_i32_0 = arith.constant 0 : i32
    return %c0_i32, %1 : i32, i32
  }
  func.func @transform_6(%arg0: i32, %arg1: i32, %arg2: i32) -> (i32, i32) {
    %0 = arith.muli %arg2, %arg1 : i32
    %c0_i32 = arith.constant 0 : i32
    %c0_i32_0 = arith.constant 0 : i32
    return %c0_i32, %0 : i32, i32
  }
  func.func @transform_7(%arg0: i32, %arg1: i32, %arg2: i32) -> (i32, i32) {
    %0 = arith.muli %arg2, %arg1 : i32
    %c0_i32 = arith.constant 0 : i32
    %c0_i32_0 = arith.constant 0 : i32
    return %c0_i32, %0 : i32, i32
  }
  func.func @transform_8(%arg0: i32, %arg1: i32, %arg2: i32) -> (i32, i32) {
    %0 = arith.muli %arg2, %arg1 : i32
    %c0_i32 = arith.constant 0 : i32
    return %arg0, %0 : i32, i32
  }
  func.func @transform_9(%arg0: i32, %arg1: i32, %arg2: i32) -> (i32, i32) {
    %0 = arith.muli %arg2, %arg1 : i32
    %c0_i32 = arith.constant 0 : i32
    return %arg0, %0 : i32, i32
  }
  func.func @transform_10(%arg0: i32, %arg1: i32, %arg2: i32) -> (i32, i32) {
    %0 = arith.muli %arg2, %arg1 : i32
    %c0_i32 = arith.constant 0 : i32
    return %arg0, %0 : i32, i32
  }
  func.func @transform_11(%arg0: i32, %arg1: i32, %arg2: i32) -> (i32, i32) {
    %0 = arith.muli %arg2, %arg1 : i32
    %c0_i32 = arith.constant 0 : i32
    return %arg0, %0 : i32, i32
  }
}

</mosaic_0001>

<llo_original>
// kernel: tpu_custom_call.1
$region0: #{tpu_custom_call.1}
  #allocation0 [shape = 'u32[]', space=smem, size = 0x4, offset = 0x4, fixed_abs, tag = 'smem constant byte address 0x4 - core index']
  #allocation1 [shape = 'u32[144,128]{1,0:T(1,128)}', space=vmem, size = 0x12000, scoped, tag = 'internal scratch']
  #allocation2 [shape = 'bf16[16,128]{1,0:T(8,128)(2,1)}', space=vmem, size = 0x1000, scoped, tag = 'scratch operand']
  #allocation3 [shape = 'f32[16,1]{1,0:T(8,128)}', space=vmem, size = 0x2000, scoped, tag = 'scratch operand']
  #allocation4 [shape = 'f32[16,1]{1,0:T(8,128)}', space=vmem, size = 0x2000, scoped, tag = 'scratch operand']
  %s0 = inlined_call_operand.vmem [shape: bf16[32,128], index: 0, kind: input, shape index: {}]
  %s1 = inlined_call_operand.vmem [shape: f32[32,1], index: 1, kind: input, shape index: {}]
  %s2 = inlined_call_operand.hbm [shape: bf16[128,128], index: 2, kind: input, shape index: {}]
  %s3 = inlined_call_operand.vmem [shape: f32[1,128], index: 3, kind: input, shape index: {}]
  %s4 = inlined_call_operand.hbm [shape: bf16[128,256], index: 4, kind: input, shape index: {}]
  %s5 = inlined_call_operand.vmem [shape: f32[1,256], index: 5, kind: input, shape index: {}]
  %s6 = inlined_call_operand.hbm [shape: bf16[128,768], index: 6, kind: input, shape index: {}]
  %s7 = inlined_call_operand.vmem [shape: f32[1,768], index: 7, kind: input, shape index: {}]
  %s8 = inlined_call_operand.hbm [shape: f32[32,256], index: 8, kind: output, shape index: {0}]
  %s9 = inlined_call_operand.hbm [shape: f32[32,256], index: 9, kind: output, shape index: {1}]
  %s10 = inlined_call_operand.hbm [shape: bf16[32,256], index: 10, kind: output, shape index: {2}]
  %s11 = inlined_call_operand.hbm [shape: bf16[32,256], index: 11, kind: output, shape index: {3}]
  %12 = xla_tuple %s8, %s9, %s10, %s11
  %s13 = sld [smem:[#allocation0]]
  $region113: #{tpu_custom_call.1} parent=0
    _
  %s15 = ssub.s32 1, %s13
  %s16 = scalar_select 0, %s15, %s13
  $region1: #{tpu_custom_call.1} parent=0
    #allocation5 [shape = 'u8[32768]{0}', space=vmem, size = 0x8000, scoped, tag = 'input window, operand 2, single buffered']
    #allocation6 [shape = 's32[2]{0}', space=sflag, size = 0x8, scoped, tag = 'scoped memory for tpu_custom_call.1']
    #allocation7 [shape = 's32[2]{0}', space=sflag, size = 0x8, scoped, tag = 'scoped memory for tpu_custom_call.1']
    #allocation8 [shape = 'u8[131072]{0}', space=vmem, size = 0x20000, scoped, tag = 'input window, operand 4']
    #allocation9 [shape = 's32[2]{0}', space=sflag, size = 0x8, scoped, tag = 'scoped memory for tpu_custom_call.1']
    #allocation10 [shape = 'u8[393216]{0}', space=vmem, size = 0x60000, scoped, tag = 'input window, operand 6']
    #allocation11 [shape = 'u8[32768]{0}', space=vmem, size = 0x8000, scoped, tag = 'output window, operand 0']
    #allocation12 [shape = 'u8[32768]{0}', space=vmem, size = 0x8000, scoped, tag = 'output window, operand 1']
    #allocation13 [shape = 's32[2]{0}', space=sflag, size = 0x8, scoped, tag = 'scoped memory for tpu_custom_call.1']
    #allocation14 [shape = 'u8[16384]{0}', space=vmem, size = 0x4000, scoped, tag = 'output window, operand 2']
    #allocation15 [shape = 'u8[16384]{0}', space=vmem, size = 0x4000, scoped, tag = 'output window, operand 3']
    #allocation16 [shape = 's32[2]{0}', space=sflag, size = 0x8, scoped, tag = 'scoped memory for tpu_custom_call.1']
    %17 = vsyncpa [#allocation6], 0
    %18 = vsyncpa [#allocation9], 0
    %s19 = scalar_lea.sflag [#allocation9], 1
    %20 = vsyncpa %s19, 0
    %21 = vsyncpa [#allocation7], 0
    %s22 = scalar_lea.sflag [#allocation7], 1
    %23 = vsyncpa %s22, 0
    %24 = vsyncpa [#allocation13], 0
    %s25 = scalar_lea.sflag [#allocation13], 1
    %26 = vsyncpa %s25, 0
    %27 = vsyncpa [#allocation16], 0
    %s28 = scalar_lea.sflag [#allocation16], 1
    %29 = vsyncpa %s28, 0
    loop: start=0, step=1, limit=6
    $region2: #{tpu_custom_call.1} parent=1 // loop_pre_header
      _
    $region3: #{tpu_custom_call.1} parent=1 // loop_header
      %s31 = sphi 0, %s35
      %p32 = scmp.ge.s32.totalorder %s31, 6
      %s38 = sphi 0, %s57
      %s39 = sphi 0, %s53
      %s40 = sphi 0, %s49
      %s41 = sphi 0, %s38
      %s42 = sphi 0, %s39
      %s43 = sphi 0, %s40
      %s44 = sphi 0, %s41
      %s45 = sphi 0, %s42
      %s46 = sphi 0, %s43
      %s60 = sphi 0, %s62
      %s63 = sphi 0, %s60
      %s64 = sphi 0, %s63
      %s80 = sphi 0, %s64
      %s86 = sphi 0, %s88
      %s89 = sphi 0, %s86
      %s90 = sphi 0, %s89
      %s106 = sphi 0, %s90
      %s110 = sphi 0, %s110
      %s112 = sphi 0, %s110
      %s113 = sphi 0, %s112
      %s127 = sphi 0, %s113
      %s131 = sphi 0, %s131
      %s133 = sphi 0, %s131
      %s134 = sphi 0, %s133
      %s148 = sphi 0, %s134
      %s158 = sphi 0, %s160
      %s161 = sphi 0, %s158
      %s162 = sphi 0, %s161
      %s178 = sphi 0, %s162
      %s188 = sphi 0, %s190
      %s191 = sphi 0, %s188
      %s192 = sphi 0, %s191
      %s208 = sphi 0, %s192
      %s216 = sphi 0, %s218
      %s219 = sphi 0, %s216
      %s220 = sphi 0, %s219
      %s236 = sphi 0, %s220
      %s244 = sphi 0, %s246
      %s247 = sphi 0, %s244
      %s248 = sphi 0, %s247
      %s264 = sphi 0, %s248
      %s274 = sphi 0, %s276
      %s277 = sphi 0, %s274
      %s278 = sphi 0, %s277
      %s294 = sphi 0, %s278
      %s304 = sphi 0, %s306
      %s307 = sphi 0, %s304
      %s308 = sphi 0, %s307
      %s324 = sphi 0, %s308
      %s334 = sphi 0, %s336
      %s337 = sphi 0, %s334
      %s338 = sphi 0, %s337
      %s354 = sphi 0, %s338
      %s364 = sphi 0, %s366
      %s367 = sphi 0, %s364
      %s368 = sphi 0, %s367
      %s384 = sphi 0, %s368
    $region4: #{tpu_custom_call.1} parent=1 // loop_header_branch
      %34 = sbr.rel (%p32) target = $region8
    $region5: #{tpu_custom_call.1} parent=1 // loop_body
      %s36 = ssub.s32 %s31, 1
      %s37 = ssub.s32 %s31, 2
      %s47 = sadd.s32 1, %s40
      %p48 = scmp.ge.s32.totalorder %s47, 1
      %s49 = scalar_select %p48, 0, %s47
      %s50 = sadd.s32 1, %s39
      %s51 = scalar_select %p48, %s50, %s39
      %p52 = scmp.ge.s32.totalorder %s51, 2
      %s53 = scalar_select %p52, 0, %s51
      %s54 = sadd.s32 1, %s38
      %s55 = scalar_select %p52, %s54, %s38
      %p56 = scmp.ge.s32.totalorder %s55, 2
      %s57 = scalar_select %p56, 0, %s55
      %s58 = ssub.s32 %s38, %s57
      %p59 = scmp.eq.s32.totalorder %s58, 0
      %s61 = sadd.s32 %s60, 1
      %s62 = scalar_select %p59, %s60, %s61
      %p65 = pneg %p59
      %p66 = scmp.eq.s32.totalorder %s31, 3
      %p67 = por %p65, %p66
      %p68 = scmp.ne.s32.totalorder %s60, %s63
      %p69 = scmp.eq.s32.totalorder %s31, 0
      %p70 = por %p68, %p69
      %p71 = scmp.ne.s32.totalorder %s60, %s63
      %p72 = scmp.eq.s32.totalorder %s36, 3
      %p73 = por %p71, %p72
      %p74 = scmp.ne.s32.totalorder %s63, %s64
      %p75 = scmp.eq.s32.totalorder %s36, 0
      %p76 = por %p74, %p75
      %p77 = scmp.ne.s32.totalorder %s63, %s64
      %p78 = scmp.eq.s32.totalorder %s37, 3
      %p79 = por %p77, %p78
      %p81 = scmp.ne.s32.totalorder %s64, %s80
      %p82 = scmp.eq.s32.totalorder %s37, 0
      %p83 = por %p81, %p82
      %s84 = ssub.s32 %s38, %s57
      %p85 = scmp.eq.s32.totalorder %s84, 0
      %s87 = sadd.s32 %s86, 1
      %s88 = scalar_select %p85, %s86, %s87
      %p91 = pneg %p85
      %p92 = scmp.eq.s32.totalorder %s31, 3
      %p93 = por %p91, %p92
      %p94 = scmp.ne.s32.totalorder %s86, %s89
      %p95 = scmp.eq.s32.totalorder %s31, 0
      %p96 = por %p94, %p95
      %p97 = scmp.ne.s32.totalorder %s86, %s89
      %p98 = scmp.eq.s32.totalorder %s36, 3
      %p99 = por %p97, %p98
      %p100 = scmp.ne.s32.totalorder %s89, %s90
      %p101 = scmp.eq.s32.totalorder %s36, 0
      %p102 = por %p100, %p101
      %p103 = scmp.ne.s32.totalorder %s89, %s90
      %p104 = scmp.eq.s32.totalorder %s37, 3
      %p105 = por %p103, %p104
      %p107 = scmp.ne.s32.totalorder %s90, %s106
      %p108 = scmp.eq.s32.totalorder %s37, 0
      %p109 = por %p107, %p108
      %s111 = sadd.s32 %s110, 1
      %p114 = scmp.eq.s32.totalorder %s31, 3
      %p115 = scmp.ne.s32.totalorder %s110, %s112
      %p116 = scmp.eq.s32.totalorder %s31, 0
      %p117 = por %p115, %p116
      %p118 = scmp.ne.s32.totalorder %s110, %s112
      %p119 = scmp.eq.s32.totalorder %s36, 3
      %p120 = por %p118, %p119
      %p121 = scmp.ne.s32.totalorder %s112, %s113
      %p122 = scmp.eq.s32.totalorder %s36, 0
      %p123 = por %p121, %p122
      %p124 = scmp.ne.s32.totalorder %s112, %s113
      %p125 = scmp.eq.s32.totalorder %s37, 3
      %p126 = por %p124, %p125
      %p128 = scmp.ne.s32.totalorder %s113, %s127
      %p129 = scmp.eq.s32.totalorder %s37, 0
      %p130 = por %p128, %p129
      %s132 = sadd.s32 %s131, 1
      %p135 = scmp.eq.s32.totalorder %s31, 3
      %p136 = scmp.ne.s32.totalorder %s131, %s133
      %p137 = scmp.eq.s32.totalorder %s31, 0
      %p138 = por %p136, %p137
      %p139 = scmp.ne.s32.totalorder %s131, %s133
      %p140 = scmp.eq.s32.totalorder %s36, 3
      %p141 = por %p139, %p140
      %p142 = scmp.ne.s32.totalorder %s133, %s134
      %p143 = scmp.eq.s32.totalorder %s36, 0
      %p144 = por %p142, %p143
      %p145 = scmp.ne.s32.totalorder %s133, %s134
      %p146 = scmp.eq.s32.totalorder %s37, 3
      %p147 = por %p145, %p146
      %p149 = scmp.ne.s32.totalorder %s134, %s148
      %p150 = scmp.eq.s32.totalorder %s37, 0
      %p151 = por %p149, %p150
      %s152 = ssub.s32 1, %s39
      %s153 = smul.u32 %s40, %s152
      %s154 = ssub.s32 1, %s53
      %s155 = smul.u32 %s49, %s154
      %s156 = ssub.s32 %s153, %s155
      %p157 = scmp.eq.s32.totalorder %s156, 0
      %s159 = sadd.s32 %s158, 1
      %s160 = scalar_select %p157, %s158, %s159
      %p163 = pneg %p157
      %p164 = scmp.eq.s32.totalorder %s31, 3
      %p165 = por %p163, %p164
      %p166 = scmp.ne.s32.totalorder %s158, %s161
      %p167 = scmp.eq.s32.totalorder %s31, 0
      %p168 = por %p166, %p167
      %p169 = scmp.ne.s32.totalorder %s158, %s161
      %p170 = scmp.eq.s32.totalorder %s36, 3
      %p171 = por %p169, %p170
      %p172 = scmp.ne.s32.totalorder %s161, %s162
      %p173 = scmp.eq.s32.totalorder %s36, 0
      %p174 = por %p172, %p173
      %p175 = scmp.ne.s32.totalorder %s161, %s162
      %p176 = scmp.eq.s32.totalorder %s37, 3
      %p177 = por %p175, %p176
      %p179 = scmp.ne.s32.totalorder %s162, %s178
      %p180 = scmp.eq.s32.totalorder %s37, 0
      %p181 = por %p179, %p180
      %s182 = ssub.s32 1, %s39
      %s183 = smul.u32 %s40, %s182
      %s184 = ssub.s32 1, %s53
      %s185 = smul.u32 %s49, %s184
      %s186 = ssub.s32 %s183, %s185
      %p187 = scmp.eq.s32.totalorder %s186, 0
      %s189 = sadd.s32 %s188, 1
      %s190 = scalar_select %p187, %s188, %s189
      %p193 = pneg %p187
      %p194 = scmp.eq.s32.totalorder %s31, 3
      %p195 = por %p193, %p194
      %p196 = scmp.ne.s32.totalorder %s188, %s191
      %p197 = scmp.eq.s32.totalorder %s31, 0
      %p198 = por %p196, %p197
      %p199 = scmp.ne.s32.totalorder %s188, %s191
      %p200 = scmp.eq.s32.totalorder %s36, 3
      %p201 = por %p199, %p200
      %p202 = scmp.ne.s32.totalorder %s191, %s192
      %p203 = scmp.eq.s32.totalorder %s36, 0
      %p204 = por %p202, %p203
      %p205 = scmp.ne.s32.totalorder %s191, %s192
      %p206 = scmp.eq.s32.totalorder %s37, 3
      %p207 = por %p205, %p206
      %p209 = scmp.ne.s32.totalorder %s192, %s208
      %p210 = scmp.eq.s32.totalorder %s37, 0
      %p211 = por %p209, %p210
      %s212 = smul.u32 %s40, %s39
      %s213 = smul.u32 %s49, %s53
      %s214 = ssub.s32 %s212, %s213
      %p215 = scmp.eq.s32.totalorder %s214, 0
      %s217 = sadd.s32 %s216, 1
      %s218 = scalar_select %p215, %s216, %s217
      %p221 = pneg %p215
      %p222 = scmp.eq.s32.totalorder %s31, 3
      %p223 = por %p221, %p222
      %p224 = scmp.ne.s32.totalorder %s216, %s219
      %p225 = scmp.eq.s32.totalorder %s31, 0
      %p226 = por %p224, %p225
      %p227 = scmp.ne.s32.totalorder %s216, %s219
      %p228 = scmp.eq.s32.totalorder %s36, 3
      %p229 = por %p227, %p228
      %p230 = scmp.ne.s32.totalorder %s219, %s220
      %p231 = scmp.eq.s32.totalorder %s36, 0
      %p232 = por %p230, %p231
      %p233 = scmp.ne.s32.totalorder %s219, %s220
      %p234 = scmp.eq.s32.totalorder %s37, 3
      %p235 = por %p233, %p234
      %p237 = scmp.ne.s32.totalorder %s220, %s236
      %p238 = scmp.eq.s32.totalorder %s37, 0
      %p239 = por %p237, %p238
      %s240 = smul.u32 %s40, %s39
      %s241 = smul.u32 %s49, %s53
      %s242 = ssub.s32 %s240, %s241
      %p243 = scmp.eq.s32.totalorder %s242, 0
      %s245 = sadd.s32 %s244, 1
      %s246 = scalar_select %p243, %s244, %s245
      %p249 = pneg %p243
      %p250 = scmp.eq.s32.totalorder %s31, 3
      %p251 = por %p249, %p250
      %p252 = scmp.ne.s32.totalorder %s244, %s247
      %p253 = scmp.eq.s32.totalorder %s31, 0
      %p254 = por %p252, %p253
      %p255 = scmp.ne.s32.totalorder %s244, %s247
      %p256 = scmp.eq.s32.totalorder %s36, 3
      %p257 = por %p255, %p256
      %p258 = scmp.ne.s32.totalorder %s247, %s248
      %p259 = scmp.eq.s32.totalorder %s36, 0
      %p260 = por %p258, %p259
      %p261 = scmp.ne.s32.totalorder %s247, %s248
      %p262 = scmp.eq.s32.totalorder %s37, 3
      %p263 = por %p261, %p262
      %p265 = scmp.ne.s32.totalorder %s248, %s264
      %p266 = scmp.eq.s32.totalorder %s37, 0
      %p267 = por %p265, %p266
      %s268 = smul.u32 %s40, %s39
      %s269 = smul.u32 %s49, %s53
      %s270 = ssub.s32 %s38, %s57
      %s271 = ssub.s32 %s268, %s269
      %s272 = sor.u32 %s270, %s271
      %p273 = scmp.eq.s32.totalorder %s272, 0
      %s275 = sadd.s32 %s274, 1
      %s276 = scalar_select %p273, %s274, %s275
      %p279 = pneg %p273
      %p280 = scmp.eq.s32.totalorder %s31, 3
      %p281 = por %p279, %p280
      %p282 = scmp.ne.s32.totalorder %s274, %s277
      %p283 = scmp.eq.s32.totalorder %s31, 0
      %p284 = por %p282, %p283
      %p285 = scmp.ne.s32.totalorder %s274, %s277
      %p286 = scmp.eq.s32.totalorder %s36, 3
      %p287 = por %p285, %p286
      %p288 = scmp.ne.s32.totalorder %s277, %s278
      %p289 = scmp.eq.s32.totalorder %s36, 0
      %p290 = por %p288, %p289
      %p291 = scmp.ne.s32.totalorder %s277, %s278
      %p292 = scmp.eq.s32.totalorder %s37, 3
      %p293 = por %p291, %p292
      %p295 = scmp.ne.s32.totalorder %s278, %s294
      %p296 = scmp.eq.s32.totalorder %s37, 0
      %p297 = por %p295, %p296
      %s298 = smul.u32 %s40, %s39
      %s299 = smul.u32 %s49, %s53
      %s300 = ssub.s32 %s38, %s57
      %s301 = ssub.s32 %s298, %s299
      %s302 = sor.u32 %s300, %s301
      %p303 = scmp.eq.s32.totalorder %s302, 0
      %s305 = sadd.s32 %s304, 1
      %s306 = scalar_select %p303, %s304, %s305
      %p309 = pneg %p303
      %p310 = scmp.eq.s32.totalorder %s31, 3
      %p311 = por %p309, %p310
      %p312 = scmp.ne.s32.totalorder %s304, %s307
      %p313 = scmp.eq.s32.totalorder %s31, 0
      %p314 = por %p312, %p313
      %p315 = scmp.ne.s32.totalorder %s304, %s307
      %p316 = scmp.eq.s32.totalorder %s36, 3
      %p317 = por %p315, %p316
      %p318 = scmp.ne.s32.totalorder %s307, %s308
      %p319 = scmp.eq.s32.totalorder %s36, 0
      %p320 = por %p318, %p319
      %p321 = scmp.ne.s32.totalorder %s307, %s308
      %p322 = scmp.eq.s32.totalorder %s37, 3
      %p323 = por %p321, %p322
      %p325 = scmp.ne.s32.totalorder %s308, %s324
      %p326 = scmp.eq.s32.totalorder %s37, 0
      %p327 = por %p325, %p326
      %s328 = smul.u32 %s40, %s39
      %s329 = smul.u32 %s49, %s53
      %s330 = ssub.s32 %s38, %s57
      %s331 = ssub.s32 %s328, %s329
      %s332 = sor.u32 %s330, %s331
      %p333 = scmp.eq.s32.totalorder %s332, 0
      %s335 = sadd.s32 %s334, 1
      %s336 = scalar_select %p333, %s334, %s335
      %p339 = pneg %p333
      %p340 = scmp.eq.s32.totalorder %s31, 3
      %p341 = por %p339, %p340
      %p342 = scmp.ne.s32.totalorder %s334, %s337
      %p343 = scmp.eq.s32.totalorder %s31, 0
      %p344 = por %p342, %p343
      %p345 = scmp.ne.s32.totalorder %s334, %s337
      %p346 = scmp.eq.s32.totalorder %s36, 3
      %p347 = por %p345, %p346
      %p348 = scmp.ne.s32.totalorder %s337, %s338
      %p349 = scmp.eq.s32.totalorder %s36, 0
      %p350 = por %p348, %p349
      %p351 = scmp.ne.s32.totalorder %s337, %s338
      %p352 = scmp.eq.s32.totalorder %s37, 3
      %p353 = por %p351, %p352
      %p355 = scmp.ne.s32.totalorder %s338, %s354
      %p356 = scmp.eq.s32.totalorder %s37, 0
      %p357 = por %p355, %p356
      %s358 = smul.u32 %s40, %s39
      %s359 = smul.u32 %s49, %s53
      %s360 = ssub.s32 %s38, %s57
      %s361 = ssub.s32 %s358, %s359
      %s362 = sor.u32 %s360, %s361
      %p363 = scmp.eq.s32.totalorder %s362, 0
      %s365 = sadd.s32 %s364, 1
      %s366 = scalar_select %p363, %s364, %s365
      %p369 = pneg %p363
      %p370 = scmp.eq.s32.totalorder %s31, 3
      %p371 = por %p369, %p370
      %p372 = scmp.ne.s32.totalorder %s364, %s367
      %p373 = scmp.eq.s32.totalorder %s31, 0
      %p374 = por %p372, %p373
      %p375 = scmp.ne.s32.totalorder %s364, %s367
      %p376 = scmp.eq.s32.totalorder %s36, 3
      %p377 = por %p375, %p376
      %p378 = scmp.ne.s32.totalorder %s367, %s368
      %p379 = scmp.eq.s32.totalorder %s36, 0
      %p380 = por %p378, %p379
      %p381 = scmp.ne.s32.totalorder %s367, %s368
      %p382 = scmp.eq.s32.totalorder %s37, 3
      %p383 = por %p381, %p382
      %p385 = scmp.ne.s32.totalorder %s368, %s384
      %p386 = scmp.eq.s32.totalorder %s37, 0
      %p387 = por %p385, %p386
      %p388 = scmp.le.s32.totalorder 1, %s31
      %p389 = scmp.lt.s32.totalorder %s31, 5
      %p390 = pnand %p388, %p389
      %p391 = pneg %p390
      // Predicated region
      $region9: #{tpu_custom_call.1} parent=5 // pred_check
        _
      $region10: #{tpu_custom_call.1} parent=5 // pred_check_branch
        %393 = sbr.rel (%p390) target = $region12
      $region11: #{tpu_custom_call.1} parent=5 // pred_region
        %s394 = ssub.s32 %s31, 1
        // Predicated region
        $region13: #{tpu_custom_call.1} parent=11 // pred_check
          %p395 = pneg %p123
        $region14: #{tpu_custom_call.1} parent=11 // pred_check_branch
          %397 = sbr.rel (%p395) target = $region16
        $region15: #{tpu_custom_call.1} parent=11 // pred_region
          %s399 = ssub.s32 1024, 1024
          %400 = vsyncadd [#allocation6], %s399
          %s401 = sshll.u32 [#allocation5], 4
          %s402 = int_to_ptr.vmem [resolvable:$true] %s401
          %407 = dma.hbm_to_vmem [thread:$0]  %s2, 1024, %s402, [#allocation6], 64, 64, 4
        $region16: #{tpu_custom_call.1} parent=11 // pred_fallthru
          _
        // Predicated region
        $region17: #{tpu_custom_call.1} parent=11 // pred_check
          %p408 = pneg %p144
        $region18: #{tpu_custom_call.1} parent=11 // pred_check_branch
          %410 = sbr.rel (%p408) target = $region20
        $region19: #{tpu_custom_call.1} parent=11 // pred_region
          _
        $region20: #{tpu_custom_call.1} parent=11 // pred_fallthru
          _
      $region12: #{tpu_custom_call.1} parent=5 // pred_fallthru
        _
      %p411 = scmp.lt.s32.totalorder %s31, 4
      // Predicated region
      $region21: #{tpu_custom_call.1} parent=5 // pred_check
        %p412 = pneg %p411
      $region22: #{tpu_custom_call.1} parent=5 // pred_check_branch
        %414 = sbr.rel (%p412) target = $region24
      $region23: #{tpu_custom_call.1} parent=5 // pred_region
        // Predicated region
        $region25: #{tpu_custom_call.1} parent=23 // pred_check
          %p415 = pneg %p70
        $region26: #{tpu_custom_call.1} parent=23 // pred_check_branch
          %417 = sbr.rel (%p415) target = $region28
        $region27: #{tpu_custom_call.1} parent=23 // pred_region
          %s418 = smul.u32 2, %s38
          %p419 = scmp.lt.s32.totalorder %s418, 3
          %s420 = scalar_select %p419, %s418, 3
          %s421 = smul.addr %s420, 4
          %s422 = scalar_lea.vmem %s0, %s421
          %s423 = smul.u32 2, %s38
        $region28: #{tpu_custom_call.1} parent=23 // pred_fallthru
          _
        // Predicated region
        $region29: #{tpu_custom_call.1} parent=23 // pred_check
          %p424 = pneg %p96
        $region30: #{tpu_custom_call.1} parent=23 // pred_check_branch
          %426 = sbr.rel (%p424) target = $region32
        $region31: #{tpu_custom_call.1} parent=23 // pred_region
          %s427 = smul.u32 2, %s38
          %p428 = scmp.lt.s32.totalorder %s427, 3
          %s429 = scalar_select %p428, %s427, 3
          %s430 = smul.addr %s429, 8
          %s431 = scalar_lea.vmem %s1, %s430
          %s432 = smul.u32 2, %s38
        $region32: #{tpu_custom_call.1} parent=23 // pred_fallthru
          _
        // Predicated region
        $region33: #{tpu_custom_call.1} parent=23 // pred_check
          %p433 = pneg %p168
        $region34: #{tpu_custom_call.1} parent=23 // pred_check_branch
          %435 = sbr.rel (%p433) target = $region36
        $region35: #{tpu_custom_call.1} parent=23 // pred_region
          %s436 = sand.u32 %s31, 1
          %s437 = scalar_lea.sflag [#allocation9], %s436
          %s438 = sand.u32 %s158, 1
          %s439 = smul.addr %s438, 128
          %s440 = scalar_lea.vmem [#allocation8], %s439
          %s441 = ssub.s32 1, %s39
          %s442 = smul.u32 %s40, %s441
          %s443 = smul.u32 2, %s442
          %s445 = ssub.s32 2048, 2048
          %446 = vsyncadd %s437, %s445
          %s447 = smul.addr %s443, 64
          %s448 = scalar_lea.hbm %s4, %s447
          %s449 = sshll.u32 %s440, 4
          %s450 = int_to_ptr.vmem [resolvable:$true] %s449
          %455 = dma.hbm_to_vmem [thread:$0]  %s448, 2048, %s450, %s437, 128, 128, 8
        $region36: #{tpu_custom_call.1} parent=23 // pred_fallthru
          _
        // Predicated region
        $region37: #{tpu_custom_call.1} parent=23 // pred_check
          %p456 = pneg %p198
        $region38: #{tpu_custom_call.1} parent=23 // pred_check_branch
          %458 = sbr.rel (%p456) target = $region40
        $region39: #{tpu_custom_call.1} parent=23 // pred_region
          %s459 = ssub.s32 1, %s39
          %s460 = smul.u32 %s40, %s459
          %s461 = smul.u32 2, %s460
          %p462 = scmp.lt.s32.totalorder %s461, 1
          %s463 = scalar_select %p462, %s461, 1
          %s464 = scalar_lea.vmem %s5, %s463
          %s465 = ssub.s32 1, %s39
          %s466 = smul.u32 %s40, %s465
          %s467 = smul.u32 2, %s466
        $region40: #{tpu_custom_call.1} parent=23 // pred_fallthru
          _
        // Predicated region
        $region41: #{tpu_custom_call.1} parent=23 // pred_check
          %p468 = pneg %p226
        $region42: #{tpu_custom_call.1} parent=23 // pred_check_branch
          %470 = sbr.rel (%p468) target = $region44
        $region43: #{tpu_custom_call.1} parent=23 // pred_region
          %s471 = sand.u32 %s31, 1
          %s472 = scalar_lea.sflag [#allocation9], %s471
          %s473 = sand.u32 %s216, 1
          %s474 = smul.addr %s473, 384
          %s475 = scalar_lea.vmem [#allocation10], %s474
          %s476 = smul.u32 %s40, %s39
          %s477 = smul.u32 6, %s476
          %s479 = ssub.s32 6144, 6144
          %480 = vsyncadd %s472, %s479
          %s481 = smul.addr %s477, 64
          %s482 = scalar_lea.hbm %s6, %s481
          %s483 = sshll.u32 %s475, 4
          %s484 = int_to_ptr.vmem [resolvable:$true] %s483
          %489 = dma.hbm_to_vmem [thread:$0]  %s482, 6144, %s484, %s472, 384, 384, 24
        $region44: #{tpu_custom_call.1} parent=23 // pred_fallthru
          _
        // Predicated region
        $region45: #{tpu_custom_call.1} parent=23 // pred_check
          %p490 = pneg %p254
        $region46: #{tpu_custom_call.1} parent=23 // pred_check_branch
          %492 = sbr.rel (%p490) target = $region48
        $region47: #{tpu_custom_call.1} parent=23 // pred_region
          %s493 = smul.u32 %s40, %s39
          %s494 = smul.u32 6, %s493
          %p495 = scmp.lt.s32.totalorder %s494, 5
          %s496 = scalar_select %p495, %s494, 5
          %s497 = scalar_lea.vmem %s7, %s496
          %s498 = smul.u32 %s40, %s39
          %s499 = smul.u32 6, %s498
        $region48: #{tpu_custom_call.1} parent=23 // pred_fallthru
          _
      $region24: #{tpu_custom_call.1} parent=5 // pred_fallthru
        _
      %p500 = scmp.le.s32.totalorder 1, %s31
      %p501 = scmp.lt.s32.totalorder %s31, 5
      %p502 = pnand %p500, %p501
      %p503 = pneg %p502
      // Predicated region
      $region49: #{tpu_custom_call.1} parent=5 // pred_check
        _
      $region50: #{tpu_custom_call.1} parent=5 // pred_check_branch
        %505 = sbr.rel (%p502) target = $region52
      $region51: #{tpu_custom_call.1} parent=5 // pred_region
        %s506 = ssub.s32 %s31, 1
        // Predicated region
        $region53: #{tpu_custom_call.1} parent=51 // pred_check
          %p507 = pneg %p123
        $region54: #{tpu_custom_call.1} parent=51 // pred_check_branch
          %509 = sbr.rel (%p507) target = $region56
        $region55: #{tpu_custom_call.1} parent=51 // pred_region
          %510 = dma.done [#allocation6], 1024
        $region56: #{tpu_custom_call.1} parent=51 // pred_fallthru
          _
        %s511 = sand.u32 %s36, 1
        %s512 = scalar_lea.sflag [#allocation9], %s511
        %s513 = sand.u32 %s161, 1
        %s514 = smul.addr %s513, 128
        %s515 = scalar_lea.vmem [#allocation8], %s514
        // Predicated region
        $region57: #{tpu_custom_call.1} parent=51 // pred_check
          %p516 = pneg %p174
        $region58: #{tpu_custom_call.1} parent=51 // pred_check_branch
          %518 = sbr.rel (%p516) target = $region60
        $region59: #{tpu_custom_call.1} parent=51 // pred_region
          %519 = dma.done %s512, 2048
        $region60: #{tpu_custom_call.1} parent=51 // pred_fallthru
          _
        %s520 = sand.u32 %s36, 1
        %s521 = scalar_lea.sflag [#allocation9], %s520
        %s522 = sand.u32 %s219, 1
        %s523 = smul.addr %s522, 384
        %s524 = scalar_lea.vmem [#allocation10], %s523
        // Predicated region
        $region61: #{tpu_custom_call.1} parent=51 // pred_check
          %p525 = pneg %p232
        $region62: #{tpu_custom_call.1} parent=51 // pred_check_branch
          %527 = sbr.rel (%p525) target = $region64
        $region63: #{tpu_custom_call.1} parent=51 // pred_region
          %528 = dma.done %s521, 6144
        $region64: #{tpu_custom_call.1} parent=51 // pred_fallthru
          _
        %s529 = smul.u32 2, %s41
        %p530 = scmp.lt.s32.totalorder %s529, 3
        %s531 = scalar_select %p530, %s529, 3
        %s532 = smul.addr %s531, 4
        %s533 = scalar_lea.vmem %s0, %s532
        %p534 = pneg %p76
        %p535 = pneg %p73
        %s536 = smul.u32 2, %s41
        %p537 = scmp.lt.s32.totalorder %s536, 3
        %s538 = scalar_select %p537, %s536, 3
        %s539 = smul.addr %s538, 8
        %s540 = scalar_lea.vmem %s1, %s539
        %p541 = pneg %p102
        %p542 = pneg %p99
        %p543 = pneg %p123
        %p544 = pneg %p120
        %p545 = pneg %p144
        %p546 = pneg %p141
        %s547 = sand.u32 %s36, 1
        %s548 = scalar_lea.sflag [#allocation9], %s547
        %s549 = sand.u32 %s161, 1
        %s550 = smul.addr %s549, 128
        %s551 = scalar_lea.vmem [#allocation8], %s550
        %p552 = pneg %p174
        %p553 = pneg %p171
        %s554 = ssub.s32 1, %s42
        %s555 = smul.u32 %s43, %s554
        %s556 = smul.u32 2, %s555
        %p557 = scmp.lt.s32.totalorder %s556, 1
        %s558 = scalar_select %p557, %s556, 1
        %s559 = scalar_lea.vmem %s5, %s558
        %p560 = pneg %p204
        %p561 = pneg %p201
        %s562 = sand.u32 %s36, 1
        %s563 = scalar_lea.sflag [#allocation9], %s562
        %s564 = sand.u32 %s219, 1
        %s565 = smul.addr %s564, 384
        %s566 = scalar_lea.vmem [#allocation10], %s565
        %p567 = pneg %p232
        %p568 = pneg %p229
        %s569 = smul.u32 %s43, %s42
        %s570 = smul.u32 6, %s569
        %p571 = scmp.lt.s32.totalorder %s570, 5
        %s572 = scalar_select %p571, %s570, 5
        %s573 = scalar_lea.vmem %s7, %s572
        %p574 = pneg %p260
        %p575 = pneg %p257
        %p576 = pneg %p290
        %p577 = pneg %p287
        %s578 = sand.u32 %s277, 1
        %s579 = scalar_lea.sflag [#allocation7], %s578
        %s580 = sand.u32 %s277, 1
        %s581 = smul.addr %s580, 32
        %s582 = scalar_lea.vmem [#allocation11], %s581
        %p583 = pneg %p320
        %p584 = pneg %p317
        %s585 = sand.u32 %s36, 1
        %s586 = scalar_lea.sflag [#allocation13], %s585
        %s587 = sand.u32 %s307, 1
        %s588 = smul.addr %s587, 32
        %s589 = scalar_lea.vmem [#allocation12], %s588
        %p590 = pneg %p350
        %p591 = pneg %p347
        %s592 = sand.u32 %s36, 1
        %s593 = scalar_lea.sflag [#allocation13], %s592
        %s594 = sand.u32 %s337, 1
        %s595 = smul.addr %s594, 16
        %s596 = scalar_lea.vmem [#allocation14], %s595
        %p597 = pneg %p380
        %p598 = pneg %p377
        %s599 = sand.u32 %s367, 1
        %s600 = scalar_lea.sflag [#allocation16], %s599
        %s601 = sand.u32 %s367, 1
        %s602 = smul.addr %s601, 16
        %s603 = scalar_lea.vmem [#allocation15], %s602
        %s604 = smul.u32 2, %s41
        %p605 = scmp.lt.s32.totalorder %s604, 3
        %s606 = scalar_select %p605, %s604, 3
        %s607 = smul.addr %s606, 4
        %s608 = scalar_lea.vmem %s0, %s607
        %s609 = smul.u32 2, %s41
        %s610 = smul.u32 2, %s41
        %p611 = scmp.lt.s32.totalorder %s610, 3
        %s612 = scalar_select %p611, %s610, 3
        %s613 = smul.addr %s612, 8
        %s614 = scalar_lea.vmem %s1, %s613
        %s615 = smul.u32 2, %s41
        %s616 = ssub.s32 1, %s42
        %s617 = smul.u32 %s43, %s616
        %s618 = smul.u32 2, %s617
        %s619 = ssub.s32 1, %s42
        %s620 = smul.u32 %s43, %s619
        %s621 = smul.u32 2, %s620
        %p622 = scmp.lt.s32.totalorder %s621, 1
        %s623 = scalar_select %p622, %s621, 1
        %s624 = scalar_lea.vmem %s5, %s623
        %s625 = ssub.s32 1, %s42
        %s626 = smul.u32 %s43, %s625
        %s627 = smul.u32 2, %s626
        %s628 = smul.u32 %s43, %s42
        %s629 = smul.u32 6, %s628
        %s630 = smul.u32 %s43, %s42
        %s631 = smul.u32 6, %s630
        %p632 = scmp.lt.s32.totalorder %s631, 5
        %s633 = scalar_select %p632, %s631, 5
        %s634 = scalar_lea.vmem %s7, %s633
        %s635 = smul.u32 %s43, %s42
        %s636 = smul.u32 6, %s635
        %s637 = smul.u32 %s43, %s42
        %s638 = smul.u32 2, %s41
        %s639 = smul.u32 2, %s637
        %s640 = smul.u32 %s43, %s42
        %s641 = smul.u32 2, %s41
        %s642 = smul.u32 2, %s640
        %s643 = smul.u32 %s43, %s42
        %s644 = smul.u32 2, %s41
        %s645 = smul.u32 2, %s643
        %s646 = smul.u32 %s43, %s42
        %s647 = smul.u32 2, %s41
        %s648 = smul.u32 2, %s646
        %p650 = scmp.eq.s32.totalorder %s42, 0
        %p651 = scmp.eq.s32.totalorder %s43, 0
        %p652 = pnand %p650, %p651
        %p653 = pneg %p652
        // Predicated region
        $region65: #{tpu_custom_call.1} parent=51 // pred_check
          _
        $region66: #{tpu_custom_call.1} parent=51 // pred_check_branch
          %655 = sbr.rel (%p652) target = $region68
        $region67: #{tpu_custom_call.1} parent=51 // pred_region
          %v656 = vld [vmem:[%s608] sm:$0xf]
          %v657 = vld [vmem:[%s608 + $0x4] sm:$0xf]
          %v658 = vld [vmem:[#allocation5] sm:$0xf]
          %v659 = vld [vmem:[#allocation5 + $0x4] sm:$0xf]
          %v660 = vld [vmem:[#allocation5 + $0x8] sm:$0xf]
          %v661 = vld [vmem:[#allocation5 + $0xc] sm:$0xf]
          %v662 = vld [vmem:[#allocation5 + $0x10] sm:$0xf]
          %v663 = vld [vmem:[#allocation5 + $0x14] sm:$0xf]
          %v664 = vld [vmem:[#allocation5 + $0x18] sm:$0xf]
          %v665 = vld [vmem:[#allocation5 + $0x1c] sm:$0xf]
          %v666 = vld [vmem:[#allocation5 + $0x20] sm:$0xf]
          %v667 = vld [vmem:[#allocation5 + $0x24] sm:$0xf]
          %v668 = vld [vmem:[#allocation5 + $0x28] sm:$0xf]
          %v669 = vld [vmem:[#allocation5 + $0x2c] sm:$0xf]
          %v670 = vld [vmem:[#allocation5 + $0x30] sm:$0xf]
          %v671 = vld [vmem:[#allocation5 + $0x34] sm:$0xf]
          %v672 = vld [vmem:[#allocation5 + $0x38] sm:$0xf]
          %v673 = vld [vmem:[#allocation5 + $0x3c] sm:$0xf]
          %v674 = vld [vmem:[%s3] sm:$0x1]
          %v676 = vlaneseq
          %v677 = vshrl.u32 %v676, 7
          %v678 = vsub.s32 0, %v677
          %v679 = vrot.slane %v674, %v678
          %v683 = vunpack.c.l.b16 %v656
          %v684 = vunpack.c.l.b16 %v657
          %v685 = vpack.c.b16 %v684, %v683
          %v703 = vunpack.c.l.b16 %v658
          %v704 = vunpack.c.l.b16 %v659
          %v705 = vunpack.c.l.b16 %v660
          %v706 = vunpack.c.l.b16 %v661
          %v707 = vunpack.c.l.b16 %v662
          %v708 = vunpack.c.l.b16 %v663
          %v709 = vunpack.c.l.b16 %v664
          %v710 = vunpack.c.l.b16 %v665
          %v711 = vunpack.c.l.b16 %v666
          %v712 = vunpack.c.l.b16 %v667
          %v713 = vunpack.c.l.b16 %v668
          %v714 = vunpack.c.l.b16 %v669
          %v715 = vunpack.c.l.b16 %v670
          %v716 = vunpack.c.l.b16 %v671
          %v717 = vunpack.c.l.b16 %v672
          %v718 = vunpack.c.l.b16 %v673
          %v719 = vpack.c.b16 %v704, %v703
          %v720 = vpack.c.b16 %v706, %v705
          %v721 = vpack.c.b16 %v708, %v707
          %v722 = vpack.c.b16 %v710, %v709
          %v723 = vpack.c.b16 %v712, %v711
          %v724 = vpack.c.b16 %v714, %v713
          %v725 = vpack.c.b16 %v716, %v715
          %v726 = vpack.c.b16 %v718, %v717
          %735 = vmatprep.subr.bf16.mxu0 0
          %736 = vmatpush1.bf16.msra.mxu0 %v726
          %737 = vmatprep.subr.bf16.mxu0 0
          %738 = vmatpush1.bf16.msra.mxu0 %v725
          %739 = vmatprep.subr.bf16.mxu0 0
          %740 = vmatpush1.bf16.msra.mxu0 %v724
          %741 = vmatprep.subr.bf16.mxu0 0
          %742 = vmatpush1.bf16.msra.mxu0 %v723
          %743 = vmatprep.subr.bf16.mxu0 0
          %744 = vmatpush1.bf16.msra.mxu0 %v722
          %745 = vmatprep.subr.bf16.mxu0 0
          %746 = vmatpush1.bf16.msra.mxu0 %v721
          %747 = vmatprep.subr.bf16.mxu0 0
          %748 = vmatpush1.bf16.msra.mxu0 %v720
          %749 = vmatprep.subr.bf16.mxu0 0
          %750 = vmatpush1.bf16.msra.mxu0 %v719
          %751 = vmatprep.subr.bf16.mxu0 0
          %752 = vmatpush2.bf16.msra.mxu0 0
          %753 = vmatprep.subr.bf16.mxu0 0
          %754 = vmatpush2.bf16.msra.mxu0 0
          %755 = vmatprep.subr.bf16.mxu0 0
          %756 = vmatpush2.bf16.msra.mxu0 0
          %757 = vmatprep.subr.bf16.mxu0 0
          %758 = vmatpush2.bf16.msra.mxu0 0
          %759 = vmatprep.subr.bf16.mxu0 0
          %760 = vmatpush2.bf16.msra.mxu0 0
          %761 = vmatprep.subr.bf16.mxu0 0
          %762 = vmatpush2.bf16.msra.mxu0 0
          %763 = vmatprep.subr.bf16.mxu0 0
          %764 = vmatpush2.bf16.msra.mxu0 0
          %765 = vmatprep.subr.bf16.mxu0 0
          %766 = vmatpush2.bf16.msra.mxu0 0
          %767 = vmatprep.mubr.bf16.mxu0 0
          %768 = vmatmul.mubr.bf16.gmra.mxu0 %v685
          %v769 = vpop.f32.mrf.mxu0
          %v770 = vadd.f32 %v679, %v769
          %v771 = vpop.f32.mrf.mxu0
          %v772 = vpop.f32.mrf.mxu0
          %v773 = vadd.f32 %v679, %v772
          %v774 = vpop.f32.mrf.mxu0
          %775 = vdwg.mxu0
          %v776 = vmax.f32 %v770, 0.0
          %v777 = vmax.f32 %v773, 0.0
          %v778 = vpack.c.bf16 %v777, %v776
          %v780 = vunpack.c.l.b16 %v778
          %v781 = vunpack.c.h.b16 %v778
          %v782 = vpack.c.b16 %v780, %v780
          %v783 = vpack.c.b16 %v781, %v781
          %786 = vst [vmem:[#allocation2] sm:$0xf] %v782
          %787 = vst [vmem:[#allocation2 + $0x4] sm:$0xf] %v783
          %vm788 = vcmask 7168
          %789 = vst.msk [vmem:[#allocation3] sm:$0xff] %vm788, -inf
          %790 = vst.msk [vmem:[#allocation3 + $0x8] sm:$0xff] %vm788, -inf
          %791 = vst.msk [vmem:[#allocation4] sm:$0xff] %vm788, 0.0
          %792 = vst.msk [vmem:[#allocation4 + $0x8] sm:$0xff] %vm788, 0.0
        $region68: #{tpu_custom_call.1} parent=51 // pred_fallthru
          _
        %v793 = vld [vmem:[#allocation2] sm:$0xf]
        %v794 = vld [vmem:[#allocation2 + $0x4] sm:$0xf]
        // Predicated region
        $region69: #{tpu_custom_call.1} parent=51 // pred_check
          %p795 = pneg %p650
        $region70: #{tpu_custom_call.1} parent=51 // pred_check_branch
          %797 = sbr.rel (%p795) target = $region72
        $region71: #{tpu_custom_call.1} parent=51 // pred_region
          %v798 = vld [vmem:[%s515] sm:$0xff]
          %v799 = vld [vmem:[%s515 + $0x8] sm:$0xff]
          %v800 = vld [vmem:[%s515 + $0x10] sm:$0xff]
          %v801 = vld [vmem:[%s515 + $0x18] sm:$0xff]
          %v802 = vld [vmem:[%s515 + $0x20] sm:$0xff]
          %v803 = vld [vmem:[%s515 + $0x28] sm:$0xff]
          %v804 = vld [vmem:[%s515 + $0x30] sm:$0xff]
          %v805 = vld [vmem:[%s515 + $0x38] sm:$0xff]
          %v806 = vld [vmem:[%s515 + $0x40] sm:$0xff]
          %v807 = vld [vmem:[%s515 + $0x48] sm:$0xff]
          %v808 = vld [vmem:[%s515 + $0x50] sm:$0xff]
          %v809 = vld [vmem:[%s515 + $0x58] sm:$0xff]
          %v810 = vld [vmem:[%s515 + $0x60] sm:$0xff]
          %v811 = vld [vmem:[%s515 + $0x68] sm:$0xff]
          %v812 = vld [vmem:[%s515 + $0x70] sm:$0xff]
          %v813 = vld [vmem:[%s515 + $0x78] sm:$0xff]
          %v814 = vld [vmem:[%s624] sm:$0x3]
          %v816 = vlaneseq
          %v817 = vshrl.u32 %v816, 7
          %v818 = vsub.s32 0, %v817
          %v819 = vrot.slane %v814, %v818
          %v820 = vlaneseq
          %v821 = vshrl.u32 %v820, 7
          %v822 = vsub.s32 1, %v821
          %v823 = vrot.slane %v814, %v822
          %v828 = vunpack.c.l.b16 %v793
          %v829 = vunpack.c.l.b16 %v794
          %v830 = vpack.c.b16 %v829, %v828
          %v848 = vunpack.c.l.b16 %v798
          %v849 = vunpack.c.h.b16 %v798
          %v850 = vunpack.c.l.b16 %v799
          %v851 = vunpack.c.h.b16 %v799
          %v852 = vunpack.c.l.b16 %v800
          %v853 = vunpack.c.h.b16 %v800
          %v854 = vunpack.c.l.b16 %v801
          %v855 = vunpack.c.h.b16 %v801
          %v856 = vunpack.c.l.b16 %v802
          %v857 = vunpack.c.h.b16 %v802
          %v858 = vunpack.c.l.b16 %v803
          %v859 = vunpack.c.h.b16 %v803
          %v860 = vunpack.c.l.b16 %v804
          %v861 = vunpack.c.h.b16 %v804
          %v862 = vunpack.c.l.b16 %v805
          %v863 = vunpack.c.h.b16 %v805
          %v864 = vunpack.c.l.b16 %v806
          %v865 = vunpack.c.h.b16 %v806
          %v866 = vunpack.c.l.b16 %v807
          %v867 = vunpack.c.h.b16 %v807
          %v868 = vunpack.c.l.b16 %v808
          %v869 = vunpack.c.h.b16 %v808
          %v870 = vunpack.c.l.b16 %v809
          %v871 = vunpack.c.h.b16 %v809
          %v872 = vunpack.c.l.b16 %v810
          %v873 = vunpack.c.h.b16 %v810
          %v874 = vunpack.c.l.b16 %v811
          %v875 = vunpack.c.h.b16 %v811
          %v876 = vunpack.c.l.b16 %v812
          %v877 = vunpack.c.h.b16 %v812
          %v878 = vunpack.c.l.b16 %v813
          %v879 = vunpack.c.h.b16 %v813
          %v880 = vpack.c.b16 %v850, %v848
          %v881 = vpack.c.b16 %v851, %v849
          %v882 = vpack.c.b16 %v854, %v852
          %v883 = vpack.c.b16 %v855, %v853
          %v884 = vpack.c.b16 %v858, %v856
          %v885 = vpack.c.b16 %v859, %v857
          %v886 = vpack.c.b16 %v862, %v860
          %v887 = vpack.c.b16 %v863, %v861
          %v888 = vpack.c.b16 %v866, %v864
          %v889 = vpack.c.b16 %v867, %v865
          %v890 = vpack.c.b16 %v870, %v868
          %v891 = vpack.c.b16 %v871, %v869
          %v892 = vpack.c.b16 %v874, %v872
          %v893 = vpack.c.b16 %v875, %v873
          %v894 = vpack.c.b16 %v878, %v876
          %v895 = vpack.c.b16 %v879, %v877
          %912 = vmatprep.subr.bf16.mxu0 %v895
          %913 = vmatpush1.bf16.msra.mxu0 %v894
          %914 = vmatprep.subr.bf16.mxu0 %v893
          %915 = vmatpush1.bf16.msra.mxu0 %v892
          %916 = vmatprep.subr.bf16.mxu0 %v891
          %917 = vmatpush1.bf16.msra.mxu0 %v890
          %918 = vmatprep.subr.bf16.mxu0 %v889
          %919 = vmatpush1.bf16.msra.mxu0 %v888
          %920 = vmatprep.subr.bf16.mxu0 %v887
          %921 = vmatpush1.bf16.msra.mxu0 %v886
          %922 = vmatprep.subr.bf16.mxu0 %v885
          %923 = vmatpush1.bf16.msra.mxu0 %v884
          %924 = vmatprep.subr.bf16.mxu0 %v883
          %925 = vmatpush1.bf16.msra.mxu0 %v882
          %926 = vmatprep.subr.bf16.mxu0 %v881
          %927 = vmatpush1.bf16.msra.mxu0 %v880
          %928 = vmatprep.subr.bf16.mxu0 0
          %929 = vmatpush2.bf16.msra.mxu0 0
          %930 = vmatprep.subr.bf16.mxu0 0
          %931 = vmatpush2.bf16.msra.mxu0 0
          %932 = vmatprep.subr.bf16.mxu0 0
          %933 = vmatpush2.bf16.msra.mxu0 0
          %934 = vmatprep.subr.bf16.mxu0 0
          %935 = vmatpush2.bf16.msra.mxu0 0
          %936 = vmatprep.subr.bf16.mxu0 0
          %937 = vmatpush2.bf16.msra.mxu0 0
          %938 = vmatprep.subr.bf16.mxu0 0
          %939 = vmatpush2.bf16.msra.mxu0 0
          %940 = vmatprep.subr.bf16.mxu0 0
          %941 = vmatpush2.bf16.msra.mxu0 0
          %942 = vmatprep.subr.bf16.mxu0 0
          %943 = vmatpush2.bf16.msra.mxu0 0
          %944 = vmatprep.mubr.bf16.mxu0 0
          %945 = vmatmul.mubr.bf16.gmra.mxu0 %v830
          %v946 = vpop.f32.mrf.mxu0
          %v947 = vadd.f32 %v819, %v946
          %v948 = vpop.f32.mrf.mxu0
          %v949 = vadd.f32 %v823, %v948
          %v950 = vpop.f32.mrf.mxu0
          %v951 = vadd.f32 %v819, %v950
          %v952 = vpop.f32.mrf.mxu0
          %v953 = vadd.f32 %v823, %v952
          %954 = vdwg.mxu0
          %v955 = vmax.f32 %v947, %v949
          %956 = vmax.xlane.f32.xlu0 %v955
          %v957 = vpop.xlane.xlu0 %956
          %v958 = vmax.f32 %v951, %v953
          %959 = vmax.xlane.f32.xlu0 %v958
          %v960 = vpop.xlane.xlu0 %959
          %v961 = vld [vmem:[#allocation3] sm:$0xff]
          %v962 = vld [vmem:[#allocation3 + $0x8] sm:$0xff]
          %v963 = vmax.f32 %v961, %v957
          %v964 = vmax.f32 %v962, %v960
          %v965 = vld [vmem:[#allocation4] sm:$0xff]
          %v966 = vld [vmem:[#allocation4 + $0x8] sm:$0xff]
          %v967 = vsub.f32 %v961, %v963
          %v968 = vsub.f32 %v962, %v964
          %v969 = vmul.f32 %v967, 1.442695
          %v970 = vpow.pop %v969
          %v971 = vmul.f32 %v968, 1.442695
          %v972 = vpow.pop %v971
          %v973 = vmul.f32 %v965, %v970
          %v974 = vmul.f32 %v966, %v972
          %976 = vset.pattern.permute.xlu0 0
          %977 = vperm.xlu0 %976, %v963
          %v978 = vpop.permute.xlu0 %977
          %981 = vset.pattern.permute.xlu0 0
          %982 = vperm.xlu0 %981, %v964
          %v983 = vpop.permute.xlu0 %982
          %v985 = vsub.f32 %v947, %v978
          %v986 = vsub.f32 %v949, %v978
          %v987 = vsub.f32 %v951, %v983
          %v988 = vsub.f32 %v953, %v983
          %v989 = vmul.f32 %v985, 1.442695
          %v990 = vpow.pop %v989
          %v991 = vmul.f32 %v986, 1.442695
          %v992 = vpow.pop %v991
          %v993 = vmul.f32 %v987, 1.442695
          %v994 = vpow.pop %v993
          %v995 = vmul.f32 %v988, 1.442695
          %v996 = vpow.pop %v995
          %v997 = vadd.f32 %v990, %v992
          %998 = vadd.xlane.f32.xlu0 %v997
          %v999 = vpop.xlane.xlu0 %998
          %v1000 = vadd.f32 %v994, %v996
          %1001 = vadd.xlane.f32.xlu0 %v1000
          %v1002 = vpop.xlane.xlu0 %1001
          %v1003 = vadd.f32 %v973, %v999
          %v1004 = vadd.f32 %v974, %v1002
          %vm1005 = vcmask 7168
          %1006 = vst.msk [vmem:[#allocation4] sm:$0xff] %vm1005, %v1003
          %1007 = vst.msk [vmem:[#allocation4 + $0x8] sm:$0xff] %vm1005, %v1004
          %1008 = vst.msk [vmem:[#allocation3] sm:$0xff] %vm1005, %v963
          %1009 = vst.msk [vmem:[#allocation3 + $0x8] sm:$0xff] %vm1005, %v964
        $region72: #{tpu_custom_call.1} parent=51 // pred_fallthru
          _
        %p1010 = scmp.eq.s32.totalorder %s42, 1
        // Predicated region
        $region73: #{tpu_custom_call.1} parent=51 // pred_check
          %p1011 = pneg %p1010
        $region74: #{tpu_custom_call.1} parent=51 // pred_check_branch
          %1013 = sbr.rel (%p1011) target = $region76
        $region75: #{tpu_custom_call.1} parent=51 // pred_region
          %v1014 = vld [vmem:[%s524] sm:$0xff]
          %v1015 = vld [vmem:[%s524 + $0x8] sm:$0xff]
          %v1016 = vld [vmem:[%s524 + $0x10] sm:$0xff]
          %v1017 = vld [vmem:[%s524 + $0x18] sm:$0xff]
          %v1018 = vld [vmem:[%s524 + $0x20] sm:$0xff]
          %v1019 = vld [vmem:[%s524 + $0x28] sm:$0xff]
          %v1020 = vld [vmem:[%s524 + $0x30] sm:$0xff]
          %v1021 = vld [vmem:[%s524 + $0x38] sm:$0xff]
          %v1022 = vld [vmem:[%s524 + $0x40] sm:$0xff]
          %v1023 = vld [vmem:[%s524 + $0x48] sm:$0xff]
          %v1024 = vld [vmem:[%s524 + $0x50] sm:$0xff]
          %v1025 = vld [vmem:[%s524 + $0x58] sm:$0xff]
          %v1026 = vld [vmem:[%s524 + $0x60] sm:$0xff]
          %v1027 = vld [vmem:[%s524 + $0x68] sm:$0xff]
          %v1028 = vld [vmem:[%s524 + $0x70] sm:$0xff]
          %v1029 = vld [vmem:[%s524 + $0x78] sm:$0xff]
          %v1030 = vld [vmem:[%s524 + $0x80] sm:$0xff]
          %v1031 = vld [vmem:[%s524 + $0x88] sm:$0xff]
          %v1032 = vld [vmem:[%s524 + $0x90] sm:$0xff]
          %v1033 = vld [vmem:[%s524 + $0x98] sm:$0xff]
          %v1034 = vld [vmem:[%s524 + $0xa0] sm:$0xff]
          %v1035 = vld [vmem:[%s524 + $0xa8] sm:$0xff]
          %v1036 = vld [vmem:[%s524 + $0xb0] sm:$0xff]
          %v1037 = vld [vmem:[%s524 + $0xb8] sm:$0xff]
          %v1038 = vld [vmem:[%s524 + $0xc0] sm:$0xff]
          %v1039 = vld [vmem:[%s524 + $0xc8] sm:$0xff]
          %v1040 = vld [vmem:[%s524 + $0xd0] sm:$0xff]
          %v1041 = vld [vmem:[%s524 + $0xd8] sm:$0xff]
          %v1042 = vld [vmem:[%s524 + $0xe0] sm:$0xff]
          %v1043 = vld [vmem:[%s524 + $0xe8] sm:$0xff]
          %v1044 = vld [vmem:[%s524 + $0xf0] sm:$0xff]
          %v1045 = vld [vmem:[%s524 + $0xf8] sm:$0xff]
          %v1046 = vld [vmem:[%s524 + $0x100] sm:$0xff]
          %v1047 = vld [vmem:[%s524 + $0x108] sm:$0xff]
          %v1048 = vld [vmem:[%s524 + $0x110] sm:$0xff]
          %v1049 = vld [vmem:[%s524 + $0x118] sm:$0xff]
          %v1050 = vld [vmem:[%s524 + $0x120] sm:$0xff]
          %v1051 = vld [vmem:[%s524 + $0x128] sm:$0xff]
          %v1052 = vld [vmem:[%s524 + $0x130] sm:$0xff]
          %v1053 = vld [vmem:[%s524 + $0x138] sm:$0xff]
          %v1054 = vld [vmem:[%s524 + $0x140] sm:$0xff]
          %v1055 = vld [vmem:[%s524 + $0x148] sm:$0xff]
          %v1056 = vld [vmem:[%s524 + $0x150] sm:$0xff]
          %v1057 = vld [vmem:[%s524 + $0x158] sm:$0xff]
          %v1058 = vld [vmem:[%s524 + $0x160] sm:$0xff]
          %v1059 = vld [vmem:[%s524 + $0x168] sm:$0xff]
          %v1060 = vld [vmem:[%s524 + $0x170] sm:$0xff]
          %v1061 = vld [vmem:[%s524 + $0x178] sm:$0xff]
          %v1062 = vld [vmem:[%s634] sm:$0x3f]
          %v1064 = vlaneseq
          %v1065 = vshrl.u32 %v1064, 7
          %v1066 = vsub.s32 0, %v1065
          %v1067 = vrot.slane %v1062, %v1066
          %v1068 = vlaneseq
          %v1069 = vshrl.u32 %v1068, 7
          %v1070 = vsub.s32 1, %v1069
          %v1071 = vrot.slane %v1062, %v1070
          %v1072 = vlaneseq
          %v1073 = vshrl.u32 %v1072, 7
          %v1074 = vsub.s32 2, %v1073
          %v1075 = vrot.slane %v1062, %v1074
          %v1076 = vlaneseq
          %v1077 = vshrl.u32 %v1076, 7
          %v1078 = vsub.s32 3, %v1077
          %v1079 = vrot.slane %v1062, %v1078
          %v1080 = vlaneseq
          %v1081 = vshrl.u32 %v1080, 7
          %v1082 = vsub.s32 4, %v1081
          %v1083 = vrot.slane %v1062, %v1082
          %v1084 = vlaneseq
          %v1085 = vshrl.u32 %v1084, 7
          %v1086 = vsub.s32 5, %v1085
          %v1087 = vrot.slane %v1062, %v1086
          %v1096 = vunpack.c.l.b16 %v793
          %v1097 = vunpack.c.l.b16 %v794
          %v1098 = vpack.c.b16 %v1097, %v1096
          %v1148 = vunpack.c.l.b16 %v1014
          %v1149 = vunpack.c.h.b16 %v1014
          %v1150 = vunpack.c.l.b16 %v1015
          %v1151 = vunpack.c.h.b16 %v1015
          %v1152 = vunpack.c.l.b16 %v1016
          %v1153 = vunpack.c.h.b16 %v1016
          %v1154 = vunpack.c.l.b16 %v1017
          %v1155 = vunpack.c.h.b16 %v1017
          %v1156 = vunpack.c.l.b16 %v1018
          %v1157 = vunpack.c.h.b16 %v1018
          %v1158 = vunpack.c.l.b16 %v1019
          %v1159 = vunpack.c.h.b16 %v1019
          %v1160 = vunpack.c.l.b16 %v1020
          %v1161 = vunpack.c.h.b16 %v1020
          %v1162 = vunpack.c.l.b16 %v1021
          %v1163 = vunpack.c.h.b16 %v1021
          %v1164 = vunpack.c.l.b16 %v1022
          %v1165 = vunpack.c.h.b16 %v1022
          %v1166 = vunpack.c.l.b16 %v1023
          %v1167 = vunpack.c.h.b16 %v1023
          %v1168 = vunpack.c.l.b16 %v1024
          %v1169 = vunpack.c.h.b16 %v1024
          %v1170 = vunpack.c.l.b16 %v1025
          %v1171 = vunpack.c.h.b16 %v1025
          %v1172 = vunpack.c.l.b16 %v1026
          %v1173 = vunpack.c.h.b16 %v1026
          %v1174 = vunpack.c.l.b16 %v1027
          %v1175 = vunpack.c.h.b16 %v1027
          %v1176 = vunpack.c.l.b16 %v1028
          %v1177 = vunpack.c.h.b16 %v1028
          %v1178 = vunpack.c.l.b16 %v1029
          %v1179 = vunpack.c.h.b16 %v1029
          %v1180 = vunpack.c.l.b16 %v1030
          %v1181 = vunpack.c.h.b16 %v1030
          %v1182 = vunpack.c.l.b16 %v1031
          %v1183 = vunpack.c.h.b16 %v1031
          %v1184 = vunpack.c.l.b16 %v1032
          %v1185 = vunpack.c.h.b16 %v1032
          %v1186 = vunpack.c.l.b16 %v1033
          %v1187 = vunpack.c.h.b16 %v1033
          %v1188 = vunpack.c.l.b16 %v1034
          %v1189 = vunpack.c.h.b16 %v1034
          %v1190 = vunpack.c.l.b16 %v1035
          %v1191 = vunpack.c.h.b16 %v1035
          %v1192 = vunpack.c.l.b16 %v1036
          %v1193 = vunpack.c.h.b16 %v1036
          %v1194 = vunpack.c.l.b16 %v1037
          %v1195 = vunpack.c.h.b16 %v1037
          %v1196 = vunpack.c.l.b16 %v1038
          %v1197 = vunpack.c.h.b16 %v1038
          %v1198 = vunpack.c.l.b16 %v1039
          %v1199 = vunpack.c.h.b16 %v1039
          %v1200 = vunpack.c.l.b16 %v1040
          %v1201 = vunpack.c.h.b16 %v1040
          %v1202 = vunpack.c.l.b16 %v1041
          %v1203 = vunpack.c.h.b16 %v1041
          %v1204 = vunpack.c.l.b16 %v1042
          %v1205 = vunpack.c.h.b16 %v1042
          %v1206 = vunpack.c.l.b16 %v1043
          %v1207 = vunpack.c.h.b16 %v1043
          %v1208 = vunpack.c.l.b16 %v1044
          %v1209 = vunpack.c.h.b16 %v1044
          %v1210 = vunpack.c.l.b16 %v1045
          %v1211 = vunpack.c.h.b16 %v1045
          %v1212 = vunpack.c.l.b16 %v1046
          %v1213 = vunpack.c.h.b16 %v1046
          %v1214 = vunpack.c.l.b16 %v1047
          %v1215 = vunpack.c.h.b16 %v1047
          %v1216 = vunpack.c.l.b16 %v1048
          %v1217 = vunpack.c.h.b16 %v1048
          %v1218 = vunpack.c.l.b16 %v1049
          %v1219 = vunpack.c.h.b16 %v1049
          %v1220 = vunpack.c.l.b16 %v1050
          %v1221 = vunpack.c.h.b16 %v1050
          %v1222 = vunpack.c.l.b16 %v1051
          %v1223 = vunpack.c.h.b16 %v1051
          %v1224 = vunpack.c.l.b16 %v1052
          %v1225 = vunpack.c.h.b16 %v1052
          %v1226 = vunpack.c.l.b16 %v1053
          %v1227 = vunpack.c.h.b16 %v1053
          %v1228 = vunpack.c.l.b16 %v1054
          %v1229 = vunpack.c.h.b16 %v1054
          %v1230 = vunpack.c.l.b16 %v1055
          %v1231 = vunpack.c.h.b16 %v1055
          %v1232 = vunpack.c.l.b16 %v1056
          %v1233 = vunpack.c.h.b16 %v1056
          %v1234 = vunpack.c.l.b16 %v1057
          %v1235 = vunpack.c.h.b16 %v1057
          %v1236 = vunpack.c.l.b16 %v1058
          %v1237 = vunpack.c.h.b16 %v1058
          %v1238 = vunpack.c.l.b16 %v1059
          %v1239 = vunpack.c.h.b16 %v1059
          %v1240 = vunpack.c.l.b16 %v1060
          %v1241 = vunpack.c.h.b16 %v1060
          %v1242 = vunpack.c.l.b16 %v1061
          %v1243 = vunpack.c.h.b16 %v1061
          %v1244 = vpack.c.b16 %v1154, %v1148
          %v1245 = vpack.c.b16 %v1155, %v1149
          %v1246 = vpack.c.b16 %v1156, %v1150
          %v1247 = vpack.c.b16 %v1157, %v1151
          %v1248 = vpack.c.b16 %v1158, %v1152
          %v1249 = vpack.c.b16 %v1159, %v1153
          %v1250 = vpack.c.b16 %v1166, %v1160
          %v1251 = vpack.c.b16 %v1167, %v1161
          %v1252 = vpack.c.b16 %v1168, %v1162
          %v1253 = vpack.c.b16 %v1169, %v1163
          %v1254 = vpack.c.b16 %v1170, %v1164
          %v1255 = vpack.c.b16 %v1171, %v1165
          %v1256 = vpack.c.b16 %v1178, %v1172
          %v1257 = vpack.c.b16 %v1179, %v1173
          %v1258 = vpack.c.b16 %v1180, %v1174
          %v1259 = vpack.c.b16 %v1181, %v1175
          %v1260 = vpack.c.b16 %v1182, %v1176
          %v1261 = vpack.c.b16 %v1183, %v1177
          %v1262 = vpack.c.b16 %v1190, %v1184
          %v1263 = vpack.c.b16 %v1191, %v1185
          %v1264 = vpack.c.b16 %v1192, %v1186
          %v1265 = vpack.c.b16 %v1193, %v1187
          %v1266 = vpack.c.b16 %v1194, %v1188
          %v1267 = vpack.c.b16 %v1195, %v1189
          %v1268 = vpack.c.b16 %v1202, %v1196
          %v1269 = vpack.c.b16 %v1203, %v1197
          %v1270 = vpack.c.b16 %v1204, %v1198
          %v1271 = vpack.c.b16 %v1205, %v1199
          %v1272 = vpack.c.b16 %v1206, %v1200
          %v1273 = vpack.c.b16 %v1207, %v1201
          %v1274 = vpack.c.b16 %v1214, %v1208
          %v1275 = vpack.c.b16 %v1215, %v1209
          %v1276 = vpack.c.b16 %v1216, %v1210
          %v1277 = vpack.c.b16 %v1217, %v1211
          %v1278 = vpack.c.b16 %v1218, %v1212
          %v1279 = vpack.c.b16 %v1219, %v1213
          %v1280 = vpack.c.b16 %v1226, %v1220
          %v1281 = vpack.c.b16 %v1227, %v1221
          %v1282 = vpack.c.b16 %v1228, %v1222
          %v1283 = vpack.c.b16 %v1229, %v1223
          %v1284 = vpack.c.b16 %v1230, %v1224
          %v1285 = vpack.c.b16 %v1231, %v1225
          %v1286 = vpack.c.b16 %v1238, %v1232
          %v1287 = vpack.c.b16 %v1239, %v1233
          %v1288 = vpack.c.b16 %v1240, %v1234
          %v1289 = vpack.c.b16 %v1241, %v1235
          %v1290 = vpack.c.b16 %v1242, %v1236
          %v1291 = vpack.c.b16 %v1243, %v1237
          %1340 = vmatprep.subr.bf16.mxu0 %v1287
          %1341 = vmatpush1.bf16.msra.mxu0 %v1286
          %1342 = vmatprep.subr.bf16.mxu0 %v1281
          %1343 = vmatpush1.bf16.msra.mxu0 %v1280
          %1344 = vmatprep.subr.bf16.mxu0 %v1275
          %1345 = vmatpush1.bf16.msra.mxu0 %v1274
          %1346 = vmatprep.subr.bf16.mxu0 %v1269
          %1347 = vmatpush1.bf16.msra.mxu0 %v1268
          %1348 = vmatprep.subr.bf16.mxu0 %v1263
          %1349 = vmatpush1.bf16.msra.mxu0 %v1262
          %1350 = vmatprep.subr.bf16.mxu0 %v1257
          %1351 = vmatpush1.bf16.msra.mxu0 %v1256
          %1352 = vmatprep.subr.bf16.mxu0 %v1251
          %1353 = vmatpush1.bf16.msra.mxu0 %v1250
          %1354 = vmatprep.subr.bf16.mxu0 %v1245
          %1355 = vmatpush1.bf16.msra.mxu0 %v1244
          %1356 = vmatprep.subr.bf16.mxu0 0
          %1357 = vmatpush2.bf16.msra.mxu0 0
          %1358 = vmatprep.subr.bf16.mxu0 0
          %1359 = vmatpush2.bf16.msra.mxu0 0
          %1360 = vmatprep.subr.bf16.mxu0 0
          %1361 = vmatpush2.bf16.msra.mxu0 0
          %1362 = vmatprep.subr.bf16.mxu0 0
          %1363 = vmatpush2.bf16.msra.mxu0 0
          %1364 = vmatprep.subr.bf16.mxu0 0
          %1365 = vmatpush2.bf16.msra.mxu0 0
          %1366 = vmatprep.subr.bf16.mxu0 0
          %1367 = vmatpush2.bf16.msra.mxu0 0
          %1368 = vmatprep.subr.bf16.mxu0 0
          %1369 = vmatpush2.bf16.msra.mxu0 0
          %1370 = vmatprep.subr.bf16.mxu0 0
          %1371 = vmatpush2.bf16.msra.mxu0 0
          %1372 = vmatprep.mubr.bf16.mxu0 0
          %1373 = vmatmul.mubr.bf16.gmra.mxu0 %v1098
          %v1374 = vpop.f32.mrf.mxu0
          %v1375 = vadd.f32 %v1067, %v1374
          %v1376 = vpop.f32.mrf.mxu0
          %v1377 = vadd.f32 %v1071, %v1376
          %v1378 = vpop.f32.mrf.mxu0
          %v1379 = vadd.f32 %v1067, %v1378
          %v1380 = vpop.f32.mrf.mxu0
          %v1381 = vadd.f32 %v1071, %v1380
          %1382 = vdwg.mxu0
          %1383 = vmatprep.subr.bf16.mxu0 %v1289
          %1384 = vmatpush1.bf16.msra.mxu0 %v1288
          %1385 = vmatprep.subr.bf16.mxu0 %v1283
          %1386 = vmatpush1.bf16.msra.mxu0 %v1282
          %1387 = vmatprep.subr.bf16.mxu0 %v1277
          %1388 = vmatpush1.bf16.msra.mxu0 %v1276
          %1389 = vmatprep.subr.bf16.mxu0 %v1271
          %1390 = vmatpush1.bf16.msra.mxu0 %v1270
          %1391 = vmatprep.subr.bf16.mxu0 %v1265
          %1392 = vmatpush1.bf16.msra.mxu0 %v1264
          %1393 = vmatprep.subr.bf16.mxu0 %v1259
          %1394 = vmatpush1.bf16.msra.mxu0 %v1258
          %1395 = vmatprep.subr.bf16.mxu0 %v1253
          %1396 = vmatpush1.bf16.msra.mxu0 %v1252
          %1397 = vmatprep.subr.bf16.mxu0 %v1247
          %1398 = vmatpush1.bf16.msra.mxu0 %v1246
          %1399 = vmatprep.subr.bf16.mxu0 0
          %1400 = vmatpush2.bf16.msra.mxu0 0
          %1401 = vmatprep.subr.bf16.mxu0 0
          %1402 = vmatpush2.bf16.msra.mxu0 0
          %1403 = vmatprep.subr.bf16.mxu0 0
          %1404 = vmatpush2.bf16.msra.mxu0 0
          %1405 = vmatprep.subr.bf16.mxu0 0
          %1406 = vmatpush2.bf16.msra.mxu0 0
          %1407 = vmatprep.subr.bf16.mxu0 0
          %1408 = vmatpush2.bf16.msra.mxu0 0
          %1409 = vmatprep.subr.bf16.mxu0 0
          %1410 = vmatpush2.bf16.msra.mxu0 0
          %1411 = vmatprep.subr.bf16.mxu0 0
          %1412 = vmatpush2.bf16.msra.mxu0 0
          %1413 = vmatprep.subr.bf16.mxu0 0
          %1414 = vmatpush2.bf16.msra.mxu0 0
          %1415 = vmatprep.mubr.bf16.mxu0 0
          %1416 = vmatmul.mubr.bf16.gmra.mxu0 %v1098
          %v1417 = vpop.f32.mrf.mxu0
          %v1418 = vadd.f32 %v1075, %v1417
          %v1419 = vpop.f32.mrf.mxu0
          %v1420 = vadd.f32 %v1079, %v1419
          %v1421 = vpop.f32.mrf.mxu0
          %v1422 = vadd.f32 %v1075, %v1421
          %v1423 = vpop.f32.mrf.mxu0
          %v1424 = vadd.f32 %v1079, %v1423
          %1425 = vdwg.mxu0
          %1426 = vmatprep.subr.bf16.mxu0 %v1291
          %1427 = vmatpush1.bf16.msra.mxu0 %v1290
          %1428 = vmatprep.subr.bf16.mxu0 %v1285
          %1429 = vmatpush1.bf16.msra.mxu0 %v1284
          %1430 = vmatprep.subr.bf16.mxu0 %v1279
          %1431 = vmatpush1.bf16.msra.mxu0 %v1278
          %1432 = vmatprep.subr.bf16.mxu0 %v1273
          %1433 = vmatpush1.bf16.msra.mxu0 %v1272
          %1434 = vmatprep.subr.bf16.mxu0 %v1267
          %1435 = vmatpush1.bf16.msra.mxu0 %v1266
          %1436 = vmatprep.subr.bf16.mxu0 %v1261
          %1437 = vmatpush1.bf16.msra.mxu0 %v1260
          %1438 = vmatprep.subr.bf16.mxu0 %v1255
          %1439 = vmatpush1.bf16.msra.mxu0 %v1254
          %1440 = vmatprep.subr.bf16.mxu0 %v1249
          %1441 = vmatpush1.bf16.msra.mxu0 %v1248
          %1442 = vmatprep.subr.bf16.mxu0 0
          %1443 = vmatpush2.bf16.msra.mxu0 0
          %1444 = vmatprep.subr.bf16.mxu0 0
          %1445 = vmatpush2.bf16.msra.mxu0 0
          %1446 = vmatprep.subr.bf16.mxu0 0
          %1447 = vmatpush2.bf16.msra.mxu0 0
          %1448 = vmatprep.subr.bf16.mxu0 0
          %1449 = vmatpush2.bf16.msra.mxu0 0
          %1450 = vmatprep.subr.bf16.mxu0 0
          %1451 = vmatpush2.bf16.msra.mxu0 0
          %1452 = vmatprep.subr.bf16.mxu0 0
          %1453 = vmatpush2.bf16.msra.mxu0 0
          %1454 = vmatprep.subr.bf16.mxu0 0
          %1455 = vmatpush2.bf16.msra.mxu0 0
          %1456 = vmatprep.subr.bf16.mxu0 0
          %1457 = vmatpush2.bf16.msra.mxu0 0
          %1458 = vmatprep.mubr.bf16.mxu0 0
          %1459 = vmatmul.mubr.bf16.gmra.mxu0 %v1098
          %v1460 = vpop.f32.mrf.mxu0
          %v1461 = vadd.f32 %v1083, %v1460
          %v1462 = vpop.f32.mrf.mxu0
          %v1463 = vadd.f32 %v1087, %v1462
          %v1464 = vpop.f32.mrf.mxu0
          %v1465 = vadd.f32 %v1083, %v1464
          %v1466 = vpop.f32.mrf.mxu0
          %v1467 = vadd.f32 %v1087, %v1466
          %1468 = vdwg.mxu0
          %v1469 = vld [vmem:[#allocation4] sm:$0xff]
          %v1470 = vld [vmem:[#allocation4 + $0x8] sm:$0xff]
          %v1471 = vrcp.pop %v1469
          %v1472 = vrcp.pop %v1470
          %v1473 = vld [vmem:[#allocation3] sm:$0xff]
          %v1474 = vld [vmem:[#allocation3 + $0x8] sm:$0xff]
          %1476 = vset.pattern.permute.xlu0 0
          %1477 = vperm.xlu0 %1476, %v1473
          %v1478 = vpop.permute.xlu0 %1477
          %1481 = vset.pattern.permute.xlu0 0
          %1482 = vperm.xlu0 %1481, %v1474
          %v1483 = vpop.permute.xlu0 %1482
          %v1485 = vsub.f32 %v1375, %v1478
          %v1486 = vsub.f32 %v1377, %v1478
          %v1487 = vsub.f32 %v1379, %v1483
          %v1488 = vsub.f32 %v1381, %v1483
          %v1489 = vmul.f32 %v1485, 1.442695
          %v1490 = vpow.pop %v1489
          %v1491 = vmul.f32 %v1486, 1.442695
          %v1492 = vpow.pop %v1491
          %v1493 = vmul.f32 %v1487, 1.442695
          %v1494 = vpow.pop %v1493
          %v1495 = vmul.f32 %v1488, 1.442695
          %v1496 = vpow.pop %v1495
          %1498 = vset.pattern.permute.xlu0 0
          %1499 = vperm.xlu0 %1498, %v1471
          %v1500 = vpop.permute.xlu0 %1499
          %1503 = vset.pattern.permute.xlu0 0
          %1504 = vperm.xlu0 %1503, %v1472
          %v1505 = vpop.permute.xlu0 %1504
          %v1507 = vmul.f32 %v1490, %v1500
          %v1508 = vmul.f32 %v1492, %v1500
          %v1509 = vmul.f32 %v1494, %v1505
          %v1510 = vmul.f32 %v1496, %v1505
          %1511 = vst [vmem:[%s582] sm:$0xff] %v1507
          %1512 = vst [vmem:[%s582 + $0x8] sm:$0xff] %v1508
          %1513 = vst [vmem:[%s582 + $0x10] sm:$0xff] %v1509
          %1514 = vst [vmem:[%s582 + $0x18] sm:$0xff] %v1510
          %v1515 = vld [vmem:[%s614] sm:$0xff]
          %v1516 = vld [vmem:[%s614 + $0x8] sm:$0xff]
          %1518 = vset.pattern.permute.xlu0 0
          %1519 = vperm.xlu0 %1518, %v1515
          %v1520 = vpop.permute.xlu0 %1519
          %1523 = vset.pattern.permute.xlu0 0
          %1524 = vperm.xlu0 %1523, %v1516
          %v1525 = vpop.permute.xlu0 %1524
          %v1527 = vmul.f32 %v1520, %v1507
          %v1528 = vmul.f32 %v1520, %v1508
          %v1529 = vmul.f32 %v1525, %v1509
          %v1530 = vmul.f32 %v1525, %v1510
          %1531 = vst [vmem:[%s589] sm:$0xff] %v1527
          %1532 = vst [vmem:[%s589 + $0x8] sm:$0xff] %v1528
          %1533 = vst [vmem:[%s589 + $0x10] sm:$0xff] %v1529
          %1534 = vst [vmem:[%s589 + $0x18] sm:$0xff] %v1530
          %v1535 = vpack.c.bf16 %v1422, %v1418
          %v1536 = vpack.c.bf16 %v1424, %v1420
          %v1539 = vunpack.c.l.b16 %v1535
          %v1540 = vunpack.c.l.b16 %v1536
          %v1541 = vunpack.c.h.b16 %v1535
          %v1542 = vunpack.c.h.b16 %v1536
          %v1543 = vpack.c.b16 %v1540, %v1539
          %v1544 = vpack.c.b16 %v1542, %v1541
          %1547 = vst [vmem:[%s603] sm:$0xff] %v1543
          %1548 = vst [vmem:[%s603 + $0x8] sm:$0xff] %v1544
          %v1549 = vpack.c.bf16 %v1465, %v1461
          %v1550 = vpack.c.bf16 %v1467, %v1463
          %v1553 = vunpack.c.l.b16 %v1549
          %v1554 = vunpack.c.l.b16 %v1550
          %v1555 = vunpack.c.h.b16 %v1549
          %v1556 = vunpack.c.h.b16 %v1550
          %v1557 = vpack.c.b16 %v1554, %v1553
          %v1558 = vpack.c.b16 %v1556, %v1555
          %1561 = vst [vmem:[%s596] sm:$0xff] %v1557
          %1562 = vst [vmem:[%s596 + $0x8] sm:$0xff] %v1558
        $region76: #{tpu_custom_call.1} parent=51 // pred_fallthru
          _
        %s1563 = sand.u32 %s277, 1
        %s1564 = scalar_lea.sflag [#allocation7], %s1563
        %s1565 = sand.u32 %s277, 1
        %s1566 = smul.addr %s1565, 32
        %s1567 = scalar_lea.vmem [#allocation11], %s1566
        %s1568 = sand.u32 %s36, 1
        %s1569 = scalar_lea.sflag [#allocation13], %s1568
        %s1570 = sand.u32 %s307, 1
        %s1571 = smul.addr %s1570, 32
        %s1572 = scalar_lea.vmem [#allocation12], %s1571
        %s1573 = sand.u32 %s36, 1
        %s1574 = scalar_lea.sflag [#allocation13], %s1573
        %s1575 = sand.u32 %s337, 1
        %s1576 = smul.addr %s1575, 16
        %s1577 = scalar_lea.vmem [#allocation14], %s1576
        %s1578 = sand.u32 %s367, 1
        %s1579 = scalar_lea.sflag [#allocation16], %s1578
        %s1580 = sand.u32 %s367, 1
        %s1581 = smul.addr %s1580, 16
        %s1582 = scalar_lea.vmem [#allocation15], %s1581
        // Predicated region
        $region77: #{tpu_custom_call.1} parent=51 // pred_check
          %p1583 = pneg %p287
        $region78: #{tpu_custom_call.1} parent=51 // pred_check_branch
          %1585 = sbr.rel (%p1583) target = $region80
        $region79: #{tpu_custom_call.1} parent=51 // pred_region
          %s1586 = smul.u32 %s43, %s42
          %s1587 = smul.u32 2, %s41
          %s1588 = smul.u32 2, %s1586
          %s1590 = ssub.s32 512, 512
          %1591 = vsyncadd %s1564, %s1590
          %s1592 = smul.addr %s1587, 2
          %s1593 = sadd.s32 %s1588, %s1592
          %s1594 = smul.addr %s1593, 128
          %s1595 = scalar_lea.hbm %s8, %s1594
          %s1596 = sshll.u32 %s1567, 4
          %s1597 = int_to_ptr.vmem [resolvable:$true] %s1596
          %1602 = dma.vmem_to_hbm [thread:$0]  %s1597, 512, %s1595, %s1564, 256, 256, 16
        $region80: #{tpu_custom_call.1} parent=51 // pred_fallthru
          _
        // Predicated region
        $region81: #{tpu_custom_call.1} parent=51 // pred_check
          %p1603 = pneg %p317
        $region82: #{tpu_custom_call.1} parent=51 // pred_check_branch
          %1605 = sbr.rel (%p1603) target = $region84
        $region83: #{tpu_custom_call.1} parent=51 // pred_region
          %s1606 = smul.u32 %s43, %s42
          %s1607 = smul.u32 2, %s41
          %s1608 = smul.u32 2, %s1606
          %s1610 = ssub.s32 512, 512
          %1611 = vsyncadd %s1569, %s1610
          %s1612 = smul.addr %s1607, 2
          %s1613 = sadd.s32 %s1608, %s1612
          %s1614 = smul.addr %s1613, 128
          %s1615 = scalar_lea.hbm %s9, %s1614
          %s1616 = sshll.u32 %s1572, 4
          %s1617 = int_to_ptr.vmem [resolvable:$true] %s1616
          %1622 = dma.vmem_to_hbm [thread:$0]  %s1617, 512, %s1615, %s1569, 256, 256, 16
        $region84: #{tpu_custom_call.1} parent=51 // pred_fallthru
          _
        // Predicated region
        $region85: #{tpu_custom_call.1} parent=51 // pred_check
          %p1623 = pneg %p347
        $region86: #{tpu_custom_call.1} parent=51 // pred_check_branch
          %1625 = sbr.rel (%p1623) target = $region88
        $region87: #{tpu_custom_call.1} parent=51 // pred_region
          %s1626 = smul.u32 %s43, %s42
          %s1627 = smul.u32 2, %s41
          %s1628 = smul.u32 2, %s1626
          %s1630 = ssub.s32 256, 256
          %1631 = vsyncadd %s1574, %s1630
          %s1632 = smul.addr %s1627, 2
          %s1633 = sadd.s32 %s1628, %s1632
          %s1634 = smul.addr %s1633, 64
          %s1635 = scalar_lea.hbm %s10, %s1634
          %s1636 = sshll.u32 %s1577, 4
          %s1637 = int_to_ptr.vmem [resolvable:$true] %s1636
          %1642 = dma.vmem_to_hbm [thread:$0]  %s1637, 256, %s1635, %s1574, 128, 128, 8
        $region88: #{tpu_custom_call.1} parent=51 // pred_fallthru
          _
        // Predicated region
        $region89: #{tpu_custom_call.1} parent=51 // pred_check
          %p1643 = pneg %p377
        $region90: #{tpu_custom_call.1} parent=51 // pred_check_branch
          %1645 = sbr.rel (%p1643) target = $region92
        $region91: #{tpu_custom_call.1} parent=51 // pred_region
          %s1646 = smul.u32 %s43, %s42
          %s1647 = smul.u32 2, %s41
          %s1648 = smul.u32 2, %s1646
          %s1650 = ssub.s32 256, 256
          %1651 = vsyncadd %s1579, %s1650
          %s1652 = smul.addr %s1647, 2
          %s1653 = sadd.s32 %s1648, %s1652
          %s1654 = smul.addr %s1653, 64
          %s1655 = scalar_lea.hbm %s11, %s1654
          %s1656 = sshll.u32 %s1582, 4
          %s1657 = int_to_ptr.vmem [resolvable:$true] %s1656
          %1662 = dma.vmem_to_hbm [thread:$0]  %s1657, 256, %s1655, %s1579, 128, 128, 8
        $region92: #{tpu_custom_call.1} parent=51 // pred_fallthru
          _
      $region52: #{tpu_custom_call.1} parent=5 // pred_fallthru
        _
      %p1663 = scmp.le.s32.totalorder 2, %s31
      // Predicated region
      $region93: #{tpu_custom_call.1} parent=5 // pred_check
        %p1664 = pneg %p1663
      $region94: #{tpu_custom_call.1} parent=5 // pred_check_branch
        %1666 = sbr.rel (%p1664) target = $region96
      $region95: #{tpu_custom_call.1} parent=5 // pred_region
        %s1667 = ssub.s32 %s31, 2
        // Predicated region
        $region97: #{tpu_custom_call.1} parent=95 // pred_check
          %p1668 = pneg %p293
        $region98: #{tpu_custom_call.1} parent=95 // pred_check_branch
          %1670 = sbr.rel (%p1668) target = $region100
        $region99: #{tpu_custom_call.1} parent=95 // pred_region
          %s1671 = sand.u32 %s278, 1
          %s1672 = scalar_lea.sflag [#allocation7], %s1671
          %s1673 = sand.u32 %s278, 1
          %s1674 = smul.addr %s1673, 32
          %s1675 = scalar_lea.vmem [#allocation11], %s1674
          %1676 = dma.done %s1672, 512
        $region100: #{tpu_custom_call.1} parent=95 // pred_fallthru
          _
        // Predicated region
        $region101: #{tpu_custom_call.1} parent=95 // pred_check
          %p1677 = pneg %p323
        $region102: #{tpu_custom_call.1} parent=95 // pred_check_branch
          %1679 = sbr.rel (%p1677) target = $region104
        $region103: #{tpu_custom_call.1} parent=95 // pred_region
          %s1680 = sand.u32 %s37, 1
          %s1681 = scalar_lea.sflag [#allocation13], %s1680
          %s1682 = sand.u32 %s308, 1
          %s1683 = smul.addr %s1682, 32
          %s1684 = scalar_lea.vmem [#allocation12], %s1683
          %1685 = dma.done %s1681, 512
        $region104: #{tpu_custom_call.1} parent=95 // pred_fallthru
          _
        // Predicated region
        $region105: #{tpu_custom_call.1} parent=95 // pred_check
          %p1686 = pneg %p353
        $region106: #{tpu_custom_call.1} parent=95 // pred_check_branch
          %1688 = sbr.rel (%p1686) target = $region108
        $region107: #{tpu_custom_call.1} parent=95 // pred_region
          %s1689 = sand.u32 %s37, 1
          %s1690 = scalar_lea.sflag [#allocation13], %s1689
          %s1691 = sand.u32 %s338, 1
          %s1692 = smul.addr %s1691, 16
          %s1693 = scalar_lea.vmem [#allocation14], %s1692
          %1694 = dma.done %s1690, 256
        $region108: #{tpu_custom_call.1} parent=95 // pred_fallthru
          _
        // Predicated region
        $region109: #{tpu_custom_call.1} parent=95 // pred_check
          %p1695 = pneg %p383
        $region110: #{tpu_custom_call.1} parent=95 // pred_check_branch
          %1697 = sbr.rel (%p1695) target = $region112
        $region111: #{tpu_custom_call.1} parent=95 // pred_region
          %s1698 = sand.u32 %s368, 1
          %s1699 = scalar_lea.sflag [#allocation16], %s1698
          %s1700 = sand.u32 %s368, 1
          %s1701 = smul.addr %s1700, 16
          %s1702 = scalar_lea.vmem [#allocation15], %s1701
          %1703 = dma.done %s1699, 256
        $region112: #{tpu_custom_call.1} parent=95 // pred_fallthru
          _
      $region96: #{tpu_custom_call.1} parent=5 // pred_fallthru
        _
    $region6: #{tpu_custom_call.1} parent=1 // loop_footer
      %s35 = sadd.s32 1, %s31
    $region7: #{tpu_custom_call.1} parent=1 // loop_footer_branch
      %30 = sbr.rel target = $region3
    $region8: #{tpu_custom_call.1} parent=1 // loop_exit
      _
    %1704 = vsyncpa [#allocation6], 1
    %s1705 = scalar_lea.sflag [#allocation6], 1
    %1706 = vsyncpa %s1705, 1
    %1707 = vsyncpa [#allocation9], 1
    %s1708 = scalar_lea.sflag [#allocation9], 1
    %1709 = vsyncpa %s1708, 1
    %1710 = vsyncpa [#allocation7], 1
    %s1711 = scalar_lea.sflag [#allocation7], 1
    %1712 = vsyncpa %s1711, 1
    %1713 = vsyncpa [#allocation13], 1
    %s1714 = scalar_lea.sflag [#allocation13], 1
    %1715 = vsyncpa %s1714, 1
    %1716 = vsyncpa [#allocation16], 1
    %s1717 = scalar_lea.sflag [#allocation16], 1
    %1718 = vsyncpa %s1717, 1

</llo_original>
